<compile_context>
chip_gen: v5e
topology: v5e:2x2
jax: 0.10.0
libtpu: 0.0.40
codegen_flags: <defaults>
</compile_context>

<pallas_src>
import math

import jax
import jax.numpy as jnp
from jax import lax
from jax.experimental import pallas as pl
from jax.experimental.pallas import tpu as pltpu

# ---- hyperparameters (the torch script's module-level globals) ----
vocab_size = 32
maxlen     = 16
n_segments = 2
d_model    = 32
d_ff       = 64
d_k = d_v  = 8
n_heads    = 4
n_layers   = 2   # reference early-returns => only layer 0 ever executes

_LANES = 128
_VMEM = pl.BlockSpec(memory_space=pltpu.MemorySpace.VMEM)

# indices into the stacked weight operand (each block is (128, 32), zero-padded)
_W_Q, _W_O_T, _W_FC, _W_LIN, _W_FC1, _W_FC2_T, _TOK, _W_CLS = range(8)

# row indices into the packed bias / LayerNorm-vector operand (17, 128)
_EMB_G, _EMB_B = 0, 1
_BQ0    = 2                      # rows 2..2+n_heads-1: per-head b_Q chunks
_B_O    = _BQ0 + n_heads
_LN1_G  = _B_O + 1
_LN1_B  = _LN1_G + 1
_B_FC1  = _LN1_B + 1
_B_FC2  = _B_FC1 + 1
_B_FC   = _B_FC2 + 1
_B_LIN  = _B_FC + 1
_NORM_G = _B_LIN + 1
_NORM_B = _NORM_G + 1
_DEC_B  = _NORM_B + 1
_B_CLS  = _DEC_B + 1
_N_VEC  = _B_CLS + 1


# ----------------------------- in-kernel math -----------------------------

def _gelu(x):
    # tanh-form GELU: the transcendental lands on the EUP slot (otherwise idle)
    # instead of a ~10-op VALU erf polynomial.  <=~1e-3 deviation vs erf-GELU.
    c = 0.7978845608028654  # sqrt(2/pi)
    return 0.5 * x * (1.0 + jnp.tanh(c * (x + 0.044715 * x * x * x)))


def _layernorm(x, g, b):
    mu = jnp.mean(x, axis=-1, keepdims=True)
    var = jnp.mean((x - mu) ** 2, axis=-1, keepdims=True)   # biased, like torch
    return (x - mu) * lax.rsqrt(var + 1e-5) * g + b


def _dot_nt(a, w):
    # y = a @ w.T (PyTorch nn.Linear convention, W[out, in]) without
    # materializing the transpose: contract on the weight's K dim directly.
    return lax.dot_general(a, w, dimension_numbers=(((1,), (1,)), ((), ())),
                           preferred_element_type=jnp.float32)


def _dot(a, b):
    return jnp.dot(a, b, preferred_element_type=jnp.float32)


# ----------------------------- fused kernel -----------------------------

def _bert_kernel(emb_ref, pad_ref, sel_ref, wstk_ref, vec_ref, o_ref):
    """Embedding LN + encoder layer (MHA + FFN) + gathers + both heads."""
    B, S, D = emb_ref.shape
    BS = B * S
    H, DK, DV = n_heads, d_k, d_v
    M = sel_ref.shape[0] - B            # number of masked-LM rows

    vec = vec_ref[...]                  # (17, 128) packed biases / LN params

    def vrow(i, n):
        return vec[i:i + 1, 0:n]        # (1, n)

    # ---- embedding LayerNorm (result is also the MHA residual) ----
    x = emb_ref[...].reshape(BS, D)
    x2 = _layernorm(x, vrow(_EMB_G, D), vrow(_EMB_B, D))

    # ---- QKV projection: reference bug uses W_Q (and the same input tensor)
    #      for Q, K and V -> project ONCE per head and reuse. ----
    wq = wstk_ref[_W_Q]                 # (128, 32); rows [0:32] = W_Q[out, in]
    q_list = []
    for h in range(H):
        qh = _dot_nt(x2, wq[h * DK:(h + 1) * DK, :]) + vrow(_BQ0 + h, DK)
        q_list.append(qh.reshape(B, S, DK))
    q_all = jnp.concatenate(q_list, axis=0)          # (H*B, S, DK), z = h*B + b

    # ---- scaled dot-product attention: all heads in one batched einsum ----
    neg = (pad_ref[...] * jnp.float32(-1e9))[:, None, :]       # (B, 1, S)
    negz = jnp.concatenate([neg] * H, axis=0)                  # (H*B, 1, S)
    scale = jnp.float32(1.0 / math.sqrt(DK))
    sc = jnp.einsum('zqd,zkd->zqk', q_all * scale, q_all,      # q == k == v
                    preferred_element_type=jnp.float32) + negz
    sc = sc - jnp.max(sc, axis=-1, keepdims=True)
    e = jnp.exp(sc)
    attn = e * pl.reciprocal(jnp.sum(e, axis=-1, keepdims=True), approx=True)
    ctx = jnp.einsum('zqk,zkd->zqd', attn, q_all,
                     preferred_element_type=jnp.float32)       # (H*B, S, DK)

    # ---- output projection: accumulate per head (no lane concat) ----
    wot = wstk_ref[_W_O_T]              # (128, 32); rows [0:32] = W_O^T
    out_lin = _dot(ctx[0:B].reshape(BS, DV), wot[0:DV, :])
    for h in range(1, H):
        out_lin = out_lin + _dot(ctx[h * B:(h + 1) * B].reshape(BS, DV),
                                 wot[h * DV:(h + 1) * DV, :])
    att = _layernorm(out_lin + vrow(_B_O, D) + x2,             # + bias + residual
                     vrow(_LN1_G, D), vrow(_LN1_B, D))

    # ---- position-wise FFN: fc2(gelu(fc1(x))), no residual/norm in ref ----
    w1 = wstk_ref[_W_FC1]               # rows [0:64] = W_fc1[out, in]
    w2t = wstk_ref[_W_FC2_T]            # rows [0:64] = W_fc2^T
    ff = _gelu(_dot_nt(att, w1[0:d_ff, :]) + vrow(_B_FC1, d_ff))
    enc = _dot(ff, w2t[0:d_ff, :]) + vrow(_B_FC2, D)           # (BS, D)

    # ---- gather masked positions + [CLS] rows from the VMEM-resident encoder
    #      output with one tiny selection matmul (no HBM round trip) ----
    gathered = _dot(sel_ref[...], enc)                         # (M + B, D)
    hm = gathered[0:M, :]
    cls = gathered[M:M + B, :]

    # ---- pooled / classification head (128-wide, lane-dense logits) ----
    pooled = jnp.tanh(_dot_nt(cls, wstk_ref[_W_FC][0:D, :]) + vrow(_B_FC, D))
    clsf = _dot_nt(pooled, wstk_ref[_W_CLS]) + vec[_B_CLS:_B_CLS + 1, :]   # (B,128)

    # ---- masked-LM head: gelu(lin(h)) -> LayerNorm -> tied tok_embed decode --
    hm = _gelu(_dot_nt(hm, wstk_ref[_W_LIN][0:D, :]) + vrow(_B_LIN, D))
    hm = _layernorm(hm, vrow(_NORM_G, D), vrow(_NORM_B, D))
    lm = _dot_nt(hm, wstk_ref[_TOK]) + vec[_DEC_B:_DEC_B + 1, :]           # (M,128)

    # ---- single lane-dense store: rows [0:M]=LM logits, [M:M+B]=clsf ----
    pieces = [lm, clsf]
    pad_rows = o_ref.shape[0] - (M + B)
    if pad_rows:
        pieces.append(jnp.zeros((pad_rows, _LANES), jnp.float32))
    o_ref[...] = jnp.concatenate(pieces, axis=0)


# ----------------------------- parameters -----------------------------

def _pad_rows(w, rows=_LANES):
    out = jnp.zeros((rows, w.shape[1]), jnp.float32)
    return out.at[:w.shape[0], :].set(w)


def _pad_vec(v, width=_LANES):
    out = jnp.zeros((width,), jnp.float32)
    return out.at[:v.shape[0]].set(v)


def init_params(key):
    ks = jax.random.split(key, 12)

    def w(k, shape, scale=0.02):
        return (scale * jax.random.normal(k, shape)).astype(jnp.float32)

    zeros = lambda *s: jnp.zeros(s, jnp.float32)
    ones = lambda *s: jnp.ones(s, jnp.float32)

    tok_embed = w(ks[0], (vocab_size, d_model))
    pos_embed = w(ks[1], (maxlen, d_model))
    seg_embed = w(ks[2], (n_segments, d_model))
    emb_ln_g, emb_ln_b = ones(d_model), zeros(d_model)
    # encoder layer 0 (only one runs) — reference bug: W_Q used for Q, K and V
    W_Q, b_Q = w(ks[3], (d_k * n_heads, d_model)), zeros(d_k * n_heads)
    W_O, b_O = w(ks[4], (d_model, n_heads * d_v)), zeros(d_model)
    mha_ln_g, mha_ln_b = ones(d_model), zeros(d_model)
    W_fc1, b_fc1 = w(ks[5], (d_ff, d_model)), zeros(d_ff)
    W_fc2, b_fc2 = w(ks[6], (d_model, d_ff)), zeros(d_model)
    # heads
    W_fc, b_fc = w(ks[7], (d_model, d_model)), zeros(d_model)
    W_cls, b_cls = w(ks[8], (2, d_model)), zeros(2)
    W_lin, b_lin = w(ks[9], (d_model, d_model)), zeros(d_model)
    norm_g, norm_b = ones(d_model), zeros(d_model)
    decoder_bias = zeros(vocab_size)     # decoder weight tied to tok_embed

    # ---- pack weights / biases so the fused kernel takes only 5 operands ----
    wstk = jnp.stack([
        _pad_rows(W_Q),          # _W_Q
        _pad_rows(W_O.T),        # _W_O_T
        _pad_rows(W_fc),         # _W_FC
        _pad_rows(W_lin),        # _W_LIN
        _pad_rows(W_fc1),        # _W_FC1
        _pad_rows(W_fc2.T),      # _W_FC2_T
        _pad_rows(tok_embed),    # _TOK (tied decoder weight, 128-row padded)
        _pad_rows(W_cls),        # _W_CLS (128-row padded -> lane-dense logits)
    ])
    vec_rows = [emb_ln_g, emb_ln_b]
    vec_rows += [b_Q[h * d_k:(h + 1) * d_k] for h in range(n_heads)]
    vec_rows += [b_O, mha_ln_g, mha_ln_b, b_fc1, b_fc2, b_fc, b_lin,
                 norm_g, norm_b, decoder_bias, b_cls]
    vec = jnp.stack([_pad_vec(v) for v in vec_rows])
    assert vec.shape[0] == _N_VEC

    return dict(tok_embed=tok_embed, pos_embed=pos_embed, seg_embed=seg_embed,
                wstk=wstk, vec=vec)


# ----------------------------- forward pass -----------------------------

def bert_forward(p, input_ids, segment_ids, masked_pos):
    B, S = input_ids.shape
    n_pred = masked_pos.shape[1]
    M = B * n_pred

    # ---- embedding sum, pad vector, gather-selection matrix (XLA glue:
    #      integer gathers have no clean in-kernel equivalent) ----
    pos = jnp.broadcast_to(jnp.arange(S, dtype=jnp.int32), (B, S))
    emb = (jnp.take(p["tok_embed"], input_ids, axis=0)
           + jnp.take(p["pos_embed"], pos, axis=0)
           + jnp.take(p["seg_embed"], segment_ids, axis=0))          # (B, S, D)
    pad = (input_ids == 0).astype(jnp.float32)                        # (B, S)
    # rows 0..M-1 select masked positions; rows M..M+B-1 select the CLS rows.
    flat = jnp.concatenate(
        [(jnp.arange(B, dtype=jnp.int32)[:, None] * S
          + masked_pos.astype(jnp.int32)).reshape(-1),
         jnp.arange(B, dtype=jnp.int32) * S])
    sel = (flat[:, None] == jnp.arange(B * S, dtype=jnp.int32)[None, :]
           ).astype(jnp.float32)                                      # (M+B, B*S)

    out_rows = ((M + B + 7) // 8) * 8
    out = pl.pallas_call(
        _bert_kernel,
        out_shape=jax.ShapeDtypeStruct((out_rows, _LANES), jnp.float32),
        in_specs=[_VMEM] * 5,
        out_specs=_VMEM,
    )(emb, pad, sel, p["wstk"], p["vec"])

    logits_lm = out[:M, :vocab_size].reshape(B, n_pred, vocab_size)
    logits_clsf = out[M:M + B, :2]
    return logits_lm, logits_clsf


# ----------------------------- driver -----------------------------

if __name__ == "__main__":
    key = jax.random.PRNGKey(0)
    pkey, ikey, skey, mkey = jax.random.split(key, 4)
    params = init_params(pkey)

    B, S, n_pred = 2, 8, 4
    input_ids = jax.random.randint(ikey, (B, S), 1, vocab_size, dtype=jnp.int32)
    input_ids = input_ids.at[:, -2:].set(0)        # pad tokens exercise the mask
    segment_ids = jax.random.randint(skey, (B, S), 0, n_segments, dtype=jnp.int32)
    masked_pos = jax.random.randint(mkey, (B, n_pred), 0, S - 2, dtype=jnp.int32)

    fwd = jax.jit(bert_forward)
    logits_lm, logits_clsf = fwd(params, input_ids, segment_ids, masked_pos)
    jax.block_until_ready((logits_lm, logits_clsf))

    assert logits_lm.shape == (B, n_pred, vocab_size)
    assert logits_clsf.shape == (B, 2)
    assert bool(jnp.all(jnp.isfinite(logits_lm))) and bool(jnp.all(jnp.isfinite(logits_clsf)))
    print("KERNEL_OK")
</pallas_src>

<mosaic_0001>
module attributes {stable_mosaic.version = 11 : i64} {
  func.func @_bert_kernel(%arg0: memref<2x8x32xf32, #tpu.memory_space<vmem>>, %arg1: memref<2x8xf32, #tpu.memory_space<vmem>>, %arg2: memref<10x16xf32, #tpu.memory_space<vmem>>, %arg3: memref<8x128x32xf32, #tpu.memory_space<vmem>>, %arg4: memref<17x128xf32, #tpu.memory_space<vmem>>, %arg5: memref<16x128xf32, #tpu.memory_space<vmem>>) attributes {dimension_semantics = [], scalar_prefetch = 0 : i64, scratch_operands = 0 : i64, tpu.core_type = #tpu.core_type<tc>} {
    %c0 = arith.constant 0 : index
    %c0_0 = arith.constant 0 : index
    %0 = vector.load %arg4[%c0, %c0_0] : memref<17x128xf32, #tpu.memory_space<vmem>>, vector<17x128xf32>
    %c0_1 = arith.constant 0 : index
    %c0_2 = arith.constant 0 : index
    %c0_3 = arith.constant 0 : index
    %1 = vector.load %arg0[%c0_1, %c0_2, %c0_3] : memref<2x8x32xf32, #tpu.memory_space<vmem>>, vector<2x8x32xf32>
    %2 = vector.shape_cast %1 : vector<2x8x32xf32> to vector<16x32xf32>
    %3 = vector.extract_strided_slice %0 {offsets = [0, 0], sizes = [1, 32], strides = [1, 1]} : vector<17x128xf32> to vector<1x32xf32>
    %4 = vector.extract_strided_slice %0 {offsets = [1, 0], sizes = [1, 32], strides = [1, 1]} : vector<17x128xf32> to vector<1x32xf32>
    %cst = arith.constant dense<0.000000e+00> : vector<16xf32>
    %5 = vector.multi_reduction <add>, %2, %cst [1] : vector<16x32xf32> to vector<16xf32>
    %6 = vector.shape_cast %5 : vector<16xf32> to vector<16x1xf32>
    %cst_4 = arith.constant 3.200000e+01 : f32
    %7 = vector.broadcast %cst_4 : f32 to vector<16x1xf32>
    %8 = arith.divf %6, %7 : vector<16x1xf32>
    %9 = vector.broadcast %8 : vector<16x1xf32> to vector<16x32xf32>
    %10 = arith.subf %2, %9 : vector<16x32xf32>
    %11 = arith.mulf %10, %10 : vector<16x32xf32>
    %cst_5 = arith.constant dense<0.000000e+00> : vector<16xf32>
    %12 = vector.multi_reduction <add>, %11, %cst_5 [1] : vector<16x32xf32> to vector<16xf32>
    %13 = vector.shape_cast %12 : vector<16xf32> to vector<16x1xf32>
    %cst_6 = arith.constant 3.200000e+01 : f32
    %14 = vector.broadcast %cst_6 : f32 to vector<16x1xf32>
    %15 = arith.divf %13, %14 : vector<16x1xf32>
    %16 = vector.broadcast %8 : vector<16x1xf32> to vector<16x32xf32>
    %17 = arith.subf %2, %16 : vector<16x32xf32>
    %cst_7 = arith.constant 9.99999974E-6 : f32
    %18 = vector.broadcast %cst_7 : f32 to vector<16x1xf32>
    %19 = arith.addf %15, %18 : vector<16x1xf32>
    %20 = math.rsqrt %19 : vector<16x1xf32>
    %21 = vector.broadcast %20 : vector<16x1xf32> to vector<16x32xf32>
    %22 = arith.mulf %17, %21 : vector<16x32xf32>
    %23 = vector.broadcast %3 : vector<1x32xf32> to vector<16x32xf32>
    %24 = arith.mulf %22, %23 : vector<16x32xf32>
    %25 = vector.broadcast %4 : vector<1x32xf32> to vector<16x32xf32>
    %26 = arith.addf %24, %25 : vector<16x32xf32>
    %c0_8 = arith.constant 0 : index
    %c0_9 = arith.constant 0 : index
    %c0_10 = arith.constant 0 : index
    %27 = vector.load %arg3[%c0_8, %c0_9, %c0_10] : memref<8x128x32xf32, #tpu.memory_space<vmem>>, vector<1x128x32xf32>
    %28 = vector.shape_cast %27 : vector<1x128x32xf32> to vector<128x32xf32>
    %29 = vector.extract_strided_slice %28 {offsets = [0, 0], sizes = [8, 32], strides = [1, 1]} : vector<128x32xf32> to vector<8x32xf32>
    %cst_11 = arith.constant dense<0.000000e+00> : vector<16x8xf32>
    %30 = tpu.matmul %26, %29, %cst_11 {dimension_numbers = #tpu.dot_dimension_numbers<[1], [1], [0], [0], [0, 0, 1, 0], [], []>} : vector<16x32xf32>, vector<8x32xf32>, vector<16x8xf32> -> vector<16x8xf32>
    %31 = vector.extract_strided_slice %0 {offsets = [2, 0], sizes = [1, 8], strides = [1, 1]} : vector<17x128xf32> to vector<1x8xf32>
    %32 = vector.broadcast %31 : vector<1x8xf32> to vector<16x8xf32>
    %33 = arith.addf %30, %32 : vector<16x8xf32>
    %34 = vector.shape_cast %33 : vector<16x8xf32> to vector<2x8x8xf32>
    %35 = vector.extract_strided_slice %28 {offsets = [8, 0], sizes = [8, 32], strides = [1, 1]} : vector<128x32xf32> to vector<8x32xf32>
    %cst_12 = arith.constant dense<0.000000e+00> : vector<16x8xf32>
    %36 = tpu.matmul %26, %35, %cst_12 {dimension_numbers = #tpu.dot_dimension_numbers<[1], [1], [0], [0], [0, 0, 1, 0], [], []>} : vector<16x32xf32>, vector<8x32xf32>, vector<16x8xf32> -> vector<16x8xf32>
    %37 = vector.extract_strided_slice %0 {offsets = [3, 0], sizes = [1, 8], strides = [1, 1]} : vector<17x128xf32> to vector<1x8xf32>
    %38 = vector.broadcast %37 : vector<1x8xf32> to vector<16x8xf32>
    %39 = arith.addf %36, %38 : vector<16x8xf32>
    %40 = vector.shape_cast %39 : vector<16x8xf32> to vector<2x8x8xf32>
    %41 = vector.extract_strided_slice %28 {offsets = [16, 0], sizes = [8, 32], strides = [1, 1]} : vector<128x32xf32> to vector<8x32xf32>
    %cst_13 = arith.constant dense<0.000000e+00> : vector<16x8xf32>
    %42 = tpu.matmul %26, %41, %cst_13 {dimension_numbers = #tpu.dot_dimension_numbers<[1], [1], [0], [0], [0, 0, 1, 0], [], []>} : vector<16x32xf32>, vector<8x32xf32>, vector<16x8xf32> -> vector<16x8xf32>
    %43 = vector.extract_strided_slice %0 {offsets = [4, 0], sizes = [1, 8], strides = [1, 1]} : vector<17x128xf32> to vector<1x8xf32>
    %44 = vector.broadcast %43 : vector<1x8xf32> to vector<16x8xf32>
    %45 = arith.addf %42, %44 : vector<16x8xf32>
    %46 = vector.shape_cast %45 : vector<16x8xf32> to vector<2x8x8xf32>
    %47 = vector.extract_strided_slice %28 {offsets = [24, 0], sizes = [8, 32], strides = [1, 1]} : vector<128x32xf32> to vector<8x32xf32>
    %cst_14 = arith.constant dense<0.000000e+00> : vector<16x8xf32>
    %48 = tpu.matmul %26, %47, %cst_14 {dimension_numbers = #tpu.dot_dimension_numbers<[1], [1], [0], [0], [0, 0, 1, 0], [], []>} : vector<16x32xf32>, vector<8x32xf32>, vector<16x8xf32> -> vector<16x8xf32>
    %49 = vector.extract_strided_slice %0 {offsets = [5, 0], sizes = [1, 8], strides = [1, 1]} : vector<17x128xf32> to vector<1x8xf32>
    %50 = vector.broadcast %49 : vector<1x8xf32> to vector<16x8xf32>
    %51 = arith.addf %48, %50 : vector<16x8xf32>
    %52 = vector.shape_cast %51 : vector<16x8xf32> to vector<2x8x8xf32>
    %53 = tpu.concatenate %34, %40, %46, %52 in 0 : vector<2x8x8xf32>, vector<2x8x8xf32>, vector<2x8x8xf32>, vector<2x8x8xf32> -> vector<8x8x8xf32>
    %c0_15 = arith.constant 0 : index
    %c0_16 = arith.constant 0 : index
    %54 = vector.load %arg1[%c0_15, %c0_16] : memref<2x8xf32, #tpu.memory_space<vmem>>, vector<2x8xf32>
    %cst_17 = arith.constant -1.000000e+09 : f32
    %55 = vector.broadcast %cst_17 : f32 to vector<2x8xf32>
    %56 = arith.mulf %54, %55 : vector<2x8xf32>
    %57 = vector.shape_cast %56 : vector<2x8xf32> to vector<2x1x8xf32>
    %58 = tpu.concatenate %57, %57, %57, %57 in 0 : vector<2x1x8xf32>, vector<2x1x8xf32>, vector<2x1x8xf32>, vector<2x1x8xf32> -> vector<8x1x8xf32>
    %cst_18 = arith.constant 0.353553385 : f32
    %59 = vector.broadcast %cst_18 : f32 to vector<8x8x8xf32>
    %60 = arith.mulf %53, %59 : vector<8x8x8xf32>
    "tpu.trace_start"() <{level = 10 : i32, message = "zqd,zkd->zqk"}> : () -> ()
    %cst_19 = arith.constant dense<0.000000e+00> : vector<8x8x8xf32>
    %61 = tpu.matmul %60, %53, %cst_19 {dimension_numbers = #tpu.dot_dimension_numbers<[2], [2], [1], [1], [0, 0, 0, 1, 1, 1], [0], [0]>} : vector<8x8x8xf32>, vector<8x8x8xf32>, vector<8x8x8xf32> -> vector<8x8x8xf32>
    "tpu.trace_stop"() : () -> ()
    %62 = vector.broadcast %58 : vector<8x1x8xf32> to vector<8x8x8xf32>
    %63 = arith.addf %61, %62 : vector<8x8x8xf32>
    %cst_20 = arith.constant dense<0xFF800000> : vector<8x8xf32>
    %64 = vector.multi_reduction <maximumf>, %63, %cst_20 [2] : vector<8x8x8xf32> to vector<8x8xf32>
    %65 = vector.shape_cast %64 : vector<8x8xf32> to vector<8x8x1xf32>
    %66 = vector.broadcast %65 : vector<8x8x1xf32> to vector<8x8x8xf32>
    %67 = arith.subf %63, %66 : vector<8x8x8xf32>
    %68 = math.exp %67 : vector<8x8x8xf32>
    %cst_21 = arith.constant dense<0.000000e+00> : vector<8x8xf32>
    %69 = vector.multi_reduction <add>, %68, %cst_21 [2] : vector<8x8x8xf32> to vector<8x8xf32>
    %70 = vector.shape_cast %69 : vector<8x8xf32> to vector<8x8x1xf32>
    %71 = tpu.reciprocal %70 {approx = true} : vector<8x8x1xf32> -> vector<8x8x1xf32>
    %72 = vector.broadcast %71 : vector<8x8x1xf32> to vector<8x8x8xf32>
    %73 = arith.mulf %68, %72 : vector<8x8x8xf32>
    "tpu.trace_start"() <{level = 10 : i32, message = "zqk,zkd->zqd"}> : () -> ()
    %cst_22 = arith.constant dense<0.000000e+00> : vector<8x8x8xf32>
    %74 = tpu.matmul %73, %53, %cst_22 {dimension_numbers = #tpu.dot_dimension_numbers<[2], [1], [1], [2], [0, 0, 0, 1, 1, 2], [0], [0]>} : vector<8x8x8xf32>, vector<8x8x8xf32>, vector<8x8x8xf32> -> vector<8x8x8xf32>
    "tpu.trace_stop"() : () -> ()
    %c1 = arith.constant 1 : index
    %c0_23 = arith.constant 0 : index
    %c0_24 = arith.constant 0 : index
    %75 = vector.load %arg3[%c1, %c0_23, %c0_24] : memref<8x128x32xf32, #tpu.memory_space<vmem>>, vector<1x128x32xf32>
    %76 = vector.shape_cast %75 : vector<1x128x32xf32> to vector<128x32xf32>
    %77 = vector.extract_strided_slice %74 {offsets = [0, 0, 0], sizes = [2, 8, 8], strides = [1, 1, 1]} : vector<8x8x8xf32> to vector<2x8x8xf32>
    %78 = vector.shape_cast %77 : vector<2x8x8xf32> to vector<16x8xf32>
    %79 = vector.extract_strided_slice %76 {offsets = [0, 0], sizes = [8, 32], strides = [1, 1]} : vector<128x32xf32> to vector<8x32xf32>
    %cst_25 = arith.constant dense<0.000000e+00> : vector<16x32xf32>
    %80 = tpu.matmul %78, %79, %cst_25 {dimension_numbers = #tpu.dot_dimension_numbers<[1], [0], [0], [1], [0, 0, 1, 1], [], []>} : vector<16x8xf32>, vector<8x32xf32>, vector<16x32xf32> -> vector<16x32xf32>
    %81 = vector.extract_strided_slice %74 {offsets = [2, 0, 0], sizes = [2, 8, 8], strides = [1, 1, 1]} : vector<8x8x8xf32> to vector<2x8x8xf32>
    %82 = vector.shape_cast %81 : vector<2x8x8xf32> to vector<16x8xf32>
    %83 = vector.extract_strided_slice %76 {offsets = [8, 0], sizes = [8, 32], strides = [1, 1]} : vector<128x32xf32> to vector<8x32xf32>
    %cst_26 = arith.constant dense<0.000000e+00> : vector<16x32xf32>
    %84 = tpu.matmul %82, %83, %cst_26 {dimension_numbers = #tpu.dot_dimension_numbers<[1], [0], [0], [1], [0, 0, 1, 1], [], []>} : vector<16x8xf32>, vector<8x32xf32>, vector<16x32xf32> -> vector<16x32xf32>
    %85 = arith.addf %80, %84 : vector<16x32xf32>
    %86 = vector.extract_strided_slice %74 {offsets = [4, 0, 0], sizes = [2, 8, 8], strides = [1, 1, 1]} : vector<8x8x8xf32> to vector<2x8x8xf32>
    %87 = vector.shape_cast %86 : vector<2x8x8xf32> to vector<16x8xf32>
    %88 = vector.extract_strided_slice %76 {offsets = [16, 0], sizes = [8, 32], strides = [1, 1]} : vector<128x32xf32> to vector<8x32xf32>
    %cst_27 = arith.constant dense<0.000000e+00> : vector<16x32xf32>
    %89 = tpu.matmul %87, %88, %cst_27 {dimension_numbers = #tpu.dot_dimension_numbers<[1], [0], [0], [1], [0, 0, 1, 1], [], []>} : vector<16x8xf32>, vector<8x32xf32>, vector<16x32xf32> -> vector<16x32xf32>
    %90 = arith.addf %85, %89 : vector<16x32xf32>
    %91 = vector.extract_strided_slice %74 {offsets = [6, 0, 0], sizes = [2, 8, 8], strides = [1, 1, 1]} : vector<8x8x8xf32> to vector<2x8x8xf32>
    %92 = vector.shape_cast %91 : vector<2x8x8xf32> to vector<16x8xf32>
    %93 = vector.extract_strided_slice %76 {offsets = [24, 0], sizes = [8, 32], strides = [1, 1]} : vector<128x32xf32> to vector<8x32xf32>
    %cst_28 = arith.constant dense<0.000000e+00> : vector<16x32xf32>
    %94 = tpu.matmul %92, %93, %cst_28 {dimension_numbers = #tpu.dot_dimension_numbers<[1], [0], [0], [1], [0, 0, 1, 1], [], []>} : vector<16x8xf32>, vector<8x32xf32>, vector<16x32xf32> -> vector<16x32xf32>
    %95 = arith.addf %90, %94 : vector<16x32xf32>
    %96 = vector.extract_strided_slice %0 {offsets = [6, 0], sizes = [1, 32], strides = [1, 1]} : vector<17x128xf32> to vector<1x32xf32>
    %97 = vector.broadcast %96 : vector<1x32xf32> to vector<16x32xf32>
    %98 = arith.addf %95, %97 : vector<16x32xf32>
    %99 = arith.addf %98, %26 : vector<16x32xf32>
    %100 = vector.extract_strided_slice %0 {offsets = [7, 0], sizes = [1, 32], strides = [1, 1]} : vector<17x128xf32> to vector<1x32xf32>
    %101 = vector.extract_strided_slice %0 {offsets = [8, 0], sizes = [1, 32], strides = [1, 1]} : vector<17x128xf32> to vector<1x32xf32>
    %cst_29 = arith.constant dense<0.000000e+00> : vector<16xf32>
    %102 = vector.multi_reduction <add>, %99, %cst_29 [1] : vector<16x32xf32> to vector<16xf32>
    %103 = vector.shape_cast %102 : vector<16xf32> to vector<16x1xf32>
    %cst_30 = arith.constant 3.200000e+01 : f32
    %104 = vector.broadcast %cst_30 : f32 to vector<16x1xf32>
    %105 = arith.divf %103, %104 : vector<16x1xf32>
    %106 = vector.broadcast %105 : vector<16x1xf32> to vector<16x32xf32>
    %107 = arith.subf %99, %106 : vector<16x32xf32>
    %108 = arith.mulf %107, %107 : vector<16x32xf32>
    %cst_31 = arith.constant dense<0.000000e+00> : vector<16xf32>
    %109 = vector.multi_reduction <add>, %108, %cst_31 [1] : vector<16x32xf32> to vector<16xf32>
    %110 = vector.shape_cast %109 : vector<16xf32> to vector<16x1xf32>
    %cst_32 = arith.constant 3.200000e+01 : f32
    %111 = vector.broadcast %cst_32 : f32 to vector<16x1xf32>
    %112 = arith.divf %110, %111 : vector<16x1xf32>
    %113 = vector.broadcast %105 : vector<16x1xf32> to vector<16x32xf32>
    %114 = arith.subf %99, %113 : vector<16x32xf32>
    %cst_33 = arith.constant 9.99999974E-6 : f32
    %115 = vector.broadcast %cst_33 : f32 to vector<16x1xf32>
    %116 = arith.addf %112, %115 : vector<16x1xf32>
    %117 = math.rsqrt %116 : vector<16x1xf32>
    %118 = vector.broadcast %117 : vector<16x1xf32> to vector<16x32xf32>
    %119 = arith.mulf %114, %118 : vector<16x32xf32>
    %120 = vector.broadcast %100 : vector<1x32xf32> to vector<16x32xf32>
    %121 = arith.mulf %119, %120 : vector<16x32xf32>
    %122 = vector.broadcast %101 : vector<1x32xf32> to vector<16x32xf32>
    %123 = arith.addf %121, %122 : vector<16x32xf32>
    %c4 = arith.constant 4 : index
    %c0_34 = arith.constant 0 : index
    %c0_35 = arith.constant 0 : index
    %124 = vector.load %arg3[%c4, %c0_34, %c0_35] : memref<8x128x32xf32, #tpu.memory_space<vmem>>, vector<1x128x32xf32>
    %125 = vector.shape_cast %124 : vector<1x128x32xf32> to vector<128x32xf32>
    %c5 = arith.constant 5 : index
    %c0_36 = arith.constant 0 : index
    %c0_37 = arith.constant 0 : index
    %126 = vector.load %arg3[%c5, %c0_36, %c0_37] : memref<8x128x32xf32, #tpu.memory_space<vmem>>, vector<1x128x32xf32>
    %127 = vector.shape_cast %126 : vector<1x128x32xf32> to vector<128x32xf32>
    %128 = vector.extract_strided_slice %125 {offsets = [0, 0], sizes = [64, 32], strides = [1, 1]} : vector<128x32xf32> to vector<64x32xf32>
    %cst_38 = arith.constant dense<0.000000e+00> : vector<16x64xf32>
    %129 = tpu.matmul %123, %128, %cst_38 {dimension_numbers = #tpu.dot_dimension_numbers<[1], [1], [0], [0], [0, 0, 1, 0], [], []>} : vector<16x32xf32>, vector<64x32xf32>, vector<16x64xf32> -> vector<16x64xf32>
    %130 = vector.extract_strided_slice %0 {offsets = [9, 0], sizes = [1, 64], strides = [1, 1]} : vector<17x128xf32> to vector<1x64xf32>
    %131 = vector.broadcast %130 : vector<1x64xf32> to vector<16x64xf32>
    %132 = arith.addf %129, %131 : vector<16x64xf32>
    %cst_39 = arith.constant 5.000000e-01 : f32
    %133 = vector.broadcast %cst_39 : f32 to vector<16x64xf32>
    %134 = arith.mulf %133, %132 : vector<16x64xf32>
    %cst_40 = arith.constant 4.471500e-02 : f32
    %135 = vector.broadcast %cst_40 : f32 to vector<16x64xf32>
    %136 = arith.mulf %135, %132 : vector<16x64xf32>
    %137 = arith.mulf %136, %132 : vector<16x64xf32>
    %138 = arith.mulf %137, %132 : vector<16x64xf32>
    %139 = arith.addf %132, %138 : vector<16x64xf32>
    %cst_41 = arith.constant 0.797884583 : f32
    %140 = vector.broadcast %cst_41 : f32 to vector<16x64xf32>
    %141 = arith.mulf %140, %139 : vector<16x64xf32>
    %142 = math.tanh %141 : vector<16x64xf32>
    %cst_42 = arith.constant 1.000000e+00 : f32
    %143 = vector.broadcast %cst_42 : f32 to vector<16x64xf32>
    %144 = arith.addf %143, %142 : vector<16x64xf32>
    %145 = arith.mulf %134, %144 : vector<16x64xf32>
    %146 = vector.extract_strided_slice %127 {offsets = [0, 0], sizes = [64, 32], strides = [1, 1]} : vector<128x32xf32> to vector<64x32xf32>
    %cst_43 = arith.constant dense<0.000000e+00> : vector<16x32xf32>
    %147 = tpu.matmul %145, %146, %cst_43 {dimension_numbers = #tpu.dot_dimension_numbers<[1], [0], [0], [1], [0, 0, 1, 1], [], []>} : vector<16x64xf32>, vector<64x32xf32>, vector<16x32xf32> -> vector<16x32xf32>
    %148 = vector.extract_strided_slice %0 {offsets = [10, 0], sizes = [1, 32], strides = [1, 1]} : vector<17x128xf32> to vector<1x32xf32>
    %149 = vector.broadcast %148 : vector<1x32xf32> to vector<16x32xf32>
    %150 = arith.addf %147, %149 : vector<16x32xf32>
    %c0_44 = arith.constant 0 : index
    %c0_45 = arith.constant 0 : index
    %151 = vector.load %arg2[%c0_44, %c0_45] : memref<10x16xf32, #tpu.memory_space<vmem>>, vector<10x16xf32>
    %cst_46 = arith.constant dense<0.000000e+00> : vector<10x32xf32>
    %152 = tpu.matmul %151, %150, %cst_46 {dimension_numbers = #tpu.dot_dimension_numbers<[1], [0], [0], [1], [0, 0, 1, 1], [], []>} : vector<10x16xf32>, vector<16x32xf32>, vector<10x32xf32> -> vector<10x32xf32>
    %153 = vector.extract_strided_slice %152 {offsets = [0, 0], sizes = [8, 32], strides = [1, 1]} : vector<10x32xf32> to vector<8x32xf32>
    %154 = vector.extract_strided_slice %152 {offsets = [8, 0], sizes = [2, 32], strides = [1, 1]} : vector<10x32xf32> to vector<2x32xf32>
    %c2 = arith.constant 2 : index
    %c0_47 = arith.constant 0 : index
    %c0_48 = arith.constant 0 : index
    %155 = vector.load %arg3[%c2, %c0_47, %c0_48] : memref<8x128x32xf32, #tpu.memory_space<vmem>>, vector<1x128x32xf32>
    %156 = vector.shape_cast %155 : vector<1x128x32xf32> to vector<128x32xf32>
    %157 = vector.extract_strided_slice %156 {offsets = [0, 0], sizes = [32, 32], strides = [1, 1]} : vector<128x32xf32> to vector<32x32xf32>
    %cst_49 = arith.constant dense<0.000000e+00> : vector<2x32xf32>
    %158 = tpu.matmul %154, %157, %cst_49 {dimension_numbers = #tpu.dot_dimension_numbers<[1], [1], [0], [0], [0, 0, 1, 0], [], []>} : vector<2x32xf32>, vector<32x32xf32>, vector<2x32xf32> -> vector<2x32xf32>
    %159 = vector.extract_strided_slice %0 {offsets = [11, 0], sizes = [1, 32], strides = [1, 1]} : vector<17x128xf32> to vector<1x32xf32>
    %160 = vector.broadcast %159 : vector<1x32xf32> to vector<2x32xf32>
    %161 = arith.addf %158, %160 : vector<2x32xf32>
    %162 = math.tanh %161 : vector<2x32xf32>
    %c7 = arith.constant 7 : index
    %c0_50 = arith.constant 0 : index
    %c0_51 = arith.constant 0 : index
    %163 = vector.load %arg3[%c7, %c0_50, %c0_51] : memref<8x128x32xf32, #tpu.memory_space<vmem>>, vector<1x128x32xf32>
    %164 = vector.shape_cast %163 : vector<1x128x32xf32> to vector<128x32xf32>
    %cst_52 = arith.constant dense<0.000000e+00> : vector<2x128xf32>
    %165 = tpu.matmul %162, %164, %cst_52 {dimension_numbers = #tpu.dot_dimension_numbers<[1], [1], [0], [0], [0, 0, 1, 0], [], []>} : vector<2x32xf32>, vector<128x32xf32>, vector<2x128xf32> -> vector<2x128xf32>
    %166 = vector.extract_strided_slice %0 {offsets = [16, 0], sizes = [1, 128], strides = [1, 1]} : vector<17x128xf32> to vector<1x128xf32>
    %167 = vector.broadcast %166 : vector<1x128xf32> to vector<2x128xf32>
    %168 = arith.addf %165, %167 : vector<2x128xf32>
    %c3 = arith.constant 3 : index
    %c0_53 = arith.constant 0 : index
    %c0_54 = arith.constant 0 : index
    %169 = vector.load %arg3[%c3, %c0_53, %c0_54] : memref<8x128x32xf32, #tpu.memory_space<vmem>>, vector<1x128x32xf32>
    %170 = vector.shape_cast %169 : vector<1x128x32xf32> to vector<128x32xf32>
    %171 = vector.extract_strided_slice %170 {offsets = [0, 0], sizes = [32, 32], strides = [1, 1]} : vector<128x32xf32> to vector<32x32xf32>
    %cst_55 = arith.constant dense<0.000000e+00> : vector<8x32xf32>
    %172 = tpu.matmul %153, %171, %cst_55 {dimension_numbers = #tpu.dot_dimension_numbers<[1], [1], [0], [0], [0, 0, 1, 0], [], []>} : vector<8x32xf32>, vector<32x32xf32>, vector<8x32xf32> -> vector<8x32xf32>
    %173 = vector.extract_strided_slice %0 {offsets = [12, 0], sizes = [1, 32], strides = [1, 1]} : vector<17x128xf32> to vector<1x32xf32>
    %174 = vector.broadcast %173 : vector<1x32xf32> to vector<8x32xf32>
    %175 = arith.addf %172, %174 : vector<8x32xf32>
    %cst_56 = arith.constant 5.000000e-01 : f32
    %176 = vector.broadcast %cst_56 : f32 to vector<8x32xf32>
    %177 = arith.mulf %176, %175 : vector<8x32xf32>
    %cst_57 = arith.constant 4.471500e-02 : f32
    %178 = vector.broadcast %cst_57 : f32 to vector<8x32xf32>
    %179 = arith.mulf %178, %175 : vector<8x32xf32>
    %180 = arith.mulf %179, %175 : vector<8x32xf32>
    %181 = arith.mulf %180, %175 : vector<8x32xf32>
    %182 = arith.addf %175, %181 : vector<8x32xf32>
    %cst_58 = arith.constant 0.797884583 : f32
    %183 = vector.broadcast %cst_58 : f32 to vector<8x32xf32>
    %184 = arith.mulf %183, %182 : vector<8x32xf32>
    %185 = math.tanh %184 : vector<8x32xf32>
    %cst_59 = arith.constant 1.000000e+00 : f32
    %186 = vector.broadcast %cst_59 : f32 to vector<8x32xf32>
    %187 = arith.addf %186, %185 : vector<8x32xf32>
    %188 = arith.mulf %177, %187 : vector<8x32xf32>
    %189 = vector.extract_strided_slice %0 {offsets = [13, 0], sizes = [1, 32], strides = [1, 1]} : vector<17x128xf32> to vector<1x32xf32>
    %190 = vector.extract_strided_slice %0 {offsets = [14, 0], sizes = [1, 32], strides = [1, 1]} : vector<17x128xf32> to vector<1x32xf32>
    %cst_60 = arith.constant dense<0.000000e+00> : vector<8xf32>
    %191 = vector.multi_reduction <add>, %188, %cst_60 [1] : vector<8x32xf32> to vector<8xf32>
    %192 = vector.shape_cast %191 : vector<8xf32> to vector<8x1xf32>
    %cst_61 = arith.constant 3.200000e+01 : f32
    %193 = vector.broadcast %cst_61 : f32 to vector<8x1xf32>
    %194 = arith.divf %192, %193 : vector<8x1xf32>
    %195 = vector.broadcast %194 : vector<8x1xf32> to vector<8x32xf32>
    %196 = arith.subf %188, %195 : vector<8x32xf32>
    %197 = arith.mulf %196, %196 : vector<8x32xf32>
    %cst_62 = arith.constant dense<0.000000e+00> : vector<8xf32>
    %198 = vector.multi_reduction <add>, %197, %cst_62 [1] : vector<8x32xf32> to vector<8xf32>
    %199 = vector.shape_cast %198 : vector<8xf32> to vector<8x1xf32>
    %cst_63 = arith.constant 3.200000e+01 : f32
    %200 = vector.broadcast %cst_63 : f32 to vector<8x1xf32>
    %201 = arith.divf %199, %200 : vector<8x1xf32>
    %202 = vector.broadcast %194 : vector<8x1xf32> to vector<8x32xf32>
    %203 = arith.subf %188, %202 : vector<8x32xf32>
    %cst_64 = arith.constant 9.99999974E-6 : f32
    %204 = vector.broadcast %cst_64 : f32 to vector<8x1xf32>
    %205 = arith.addf %201, %204 : vector<8x1xf32>
    %206 = math.rsqrt %205 : vector<8x1xf32>
    %207 = vector.broadcast %206 : vector<8x1xf32> to vector<8x32xf32>
    %208 = arith.mulf %203, %207 : vector<8x32xf32>
    %209 = vector.broadcast %189 : vector<1x32xf32> to vector<8x32xf32>
    %210 = arith.mulf %208, %209 : vector<8x32xf32>
    %211 = vector.broadcast %190 : vector<1x32xf32> to vector<8x32xf32>
    %212 = arith.addf %210, %211 : vector<8x32xf32>
    %c6 = arith.constant 6 : index
    %c0_65 = arith.constant 0 : index
    %c0_66 = arith.constant 0 : index
    %213 = vector.load %arg3[%c6, %c0_65, %c0_66] : memref<8x128x32xf32, #tpu.memory_space<vmem>>, vector<1x128x32xf32>
    %214 = vector.shape_cast %213 : vector<1x128x32xf32> to vector<128x32xf32>
    %cst_67 = arith.constant dense<0.000000e+00> : vector<8x128xf32>
    %215 = tpu.matmul %212, %214, %cst_67 {dimension_numbers = #tpu.dot_dimension_numbers<[1], [1], [0], [0], [0, 0, 1, 0], [], []>} : vector<8x32xf32>, vector<128x32xf32>, vector<8x128xf32> -> vector<8x128xf32>
    %216 = vector.extract_strided_slice %0 {offsets = [15, 0], sizes = [1, 128], strides = [1, 1]} : vector<17x128xf32> to vector<1x128xf32>
    %217 = vector.broadcast %216 : vector<1x128xf32> to vector<8x128xf32>
    %218 = arith.addf %215, %217 : vector<8x128xf32>
    %cst_68 = arith.constant 0.000000e+00 : f32
    %219 = vector.broadcast %cst_68 : f32 to vector<6x128xf32>
    %220 = tpu.concatenate %218, %168, %219 in 0 : vector<8x128xf32>, vector<2x128xf32>, vector<6x128xf32> -> vector<16x128xf32>
    %c0_69 = arith.constant 0 : index
    %c0_70 = arith.constant 0 : index
    %221 = vector.load %arg5[%c0_69, %c0_70] : memref<16x128xf32, #tpu.memory_space<vmem>>, vector<16x128xf32>
    tpu.vector_store %arg5[%c0_69, %c0_70], %220 {strides = array<i32>} : memref<16x128xf32, #tpu.memory_space<vmem>>, vector<16x128xf32>,
    return
  }
}

</mosaic_0001>

<llo_original>
// kernel: bert_forward.1
$region0: #{bert_forward.1}
  #allocation0 [shape = 'u32[]', space=smem, size = 0x4, offset = 0x4, fixed_abs, tag = 'smem constant byte address 0x4 - core index']
  #allocation1 [shape = 'u32[72,128]{1,0:T(1,128)}', space=vmem, size = 0x9000, scoped, tag = 'internal scratch']
  %s0 = inlined_call_operand.vmem [shape: f32[2,8,32], index: 0, kind: input, shape index: {}]
  %s1 = inlined_call_operand.vmem [shape: f32[2,8], index: 1, kind: input, shape index: {}]
  %s2 = inlined_call_operand.vmem [shape: f32[10,16], index: 2, kind: input, shape index: {}]
  %s3 = inlined_call_operand.vmem [shape: f32[8,128,32], index: 3, kind: input, shape index: {}]
  %s4 = inlined_call_operand.vmem [shape: f32[17,128], index: 4, kind: input, shape index: {}]
  %s5 = inlined_call_operand.vmem [shape: f32[16,128], index: 5, kind: output, shape index: {}]
  %s6 = sld [smem:[#allocation0]]
  $region30: #{bert_forward.1} parent=0
    _
  %s8 = ssub.s32 1, %s6
  %s9 = scalar_select 0, %s8, %s6
  // Predicated region
  $region2: #{bert_forward.1} parent=0 // pred_check
    _
  $region3: #{bert_forward.1} parent=0 // pred_check_branch
    %11 = sbr.rel (0) target = $region5
  $region4: #{bert_forward.1} parent=0 // pred_region
    _
  $region5: #{bert_forward.1} parent=0 // pred_fallthru
    _
  // Predicated region
  $region6: #{bert_forward.1} parent=0 // pred_check
    _
  $region7: #{bert_forward.1} parent=0 // pred_check_branch
    %13 = sbr.rel (0) target = $region9
  $region8: #{bert_forward.1} parent=0 // pred_region
    _
  $region9: #{bert_forward.1} parent=0 // pred_fallthru
    _
  // Predicated region
  $region10: #{bert_forward.1} parent=0 // pred_check
    _
  $region11: #{bert_forward.1} parent=0 // pred_check_branch
    %15 = sbr.rel (0) target = $region13
  $region12: #{bert_forward.1} parent=0 // pred_region
    _
  $region13: #{bert_forward.1} parent=0 // pred_fallthru
    _
  // Predicated region
  $region14: #{bert_forward.1} parent=0 // pred_check
    _
  $region15: #{bert_forward.1} parent=0 // pred_check_branch
    %17 = sbr.rel (0) target = $region17
  $region16: #{bert_forward.1} parent=0 // pred_region
    _
  $region17: #{bert_forward.1} parent=0 // pred_fallthru
    _
  // Predicated region
  $region18: #{bert_forward.1} parent=0 // pred_check
    _
  $region19: #{bert_forward.1} parent=0 // pred_check_branch
    %19 = sbr.rel (0) target = $region21
  $region20: #{bert_forward.1} parent=0 // pred_region
    _
  $region21: #{bert_forward.1} parent=0 // pred_fallthru
    _
  %v20 = vld [vmem:[%s4] sm:$0xff]
  %v21 = vld [vmem:[%s4 + $0x8] sm:$0xff]
  %v22 = vld [vmem:[%s4 + $0x10] sm:$0x1]
  %v23 = vld [vmem:[%s0] sm:$0xff]
  %v24 = vld [vmem:[%s0 + $0x8] sm:$0xff]
  %vm25 = vcmask 261120
  %v26 = vsel %vm25, %v23, 0.0
  %27 = vadd.xlane.f32.xlu0 %v26
  %v28 = vpop.xlane.xlu0 %27
  %v29 = vsel %vm25, %v24, 0.0
  %30 = vadd.xlane.f32.xlu0 %v29
  %v31 = vpop.xlane.xlu0 %30
  %v32 = vrcp.pop 32.0
  %v33 = vmul.f32 32.0, %v32
  %v34 = vsub.f32 1.0, %v33
  %v35 = vmul.f32 %v32, %v34
  %v36 = vadd.f32 %v32, %v35
  %vm37 = vweird.f32 %v32
  %v38 = vsel %vm37, %v32, %v36
  %v39 = vmul.f32 %v28, %v38
  %v40 = vmul.f32 %v31, %v38
  %v41 = vsub.f32 %v23, %v39
  %v42 = vsub.f32 %v24, %v40
  %v43 = vmul.f32 %v41, %v41
  %v44 = vmul.f32 %v42, %v42
  %v45 = vsel %vm25, %v43, 0.0
  %46 = vadd.xlane.f32.xlu0 %v45
  %v47 = vpop.xlane.xlu0 %46
  %v48 = vsel %vm25, %v44, 0.0
  %49 = vadd.xlane.f32.xlu0 %v48
  %v50 = vpop.xlane.xlu0 %49
  %v51 = vmul.f32 %v47, %v38
  %v52 = vmul.f32 %v50, %v38
  %v53 = vadd.f32 %v51, 1e-05
  %v54 = vadd.f32 %v52, 1e-05
  %v55 = vrsqrt.pop %v53
  %v56 = vmul.f32 %v55, %v53
  %v57 = vmul.f32 %v56, %v55
  %v58 = vmul.f32 0.5, %v57
  %v59 = vsub.f32 1.5, %v58
  %v60 = vmul.f32 %v55, %v59
  %vm61 = vweird.f32 %v53
  %vm62 = vweird.f32 %v55
  %vm63 = vmor %vm61, %vm62
  %v64 = vsel %vm63, %v55, %v60
  %v65 = vrsqrt.pop %v54
  %v66 = vmul.f32 %v65, %v54
  %v67 = vmul.f32 %v66, %v65
  %v68 = vmul.f32 0.5, %v67
  %v69 = vsub.f32 1.5, %v68
  %v70 = vmul.f32 %v65, %v69
  %vm71 = vweird.f32 %v54
  %vm72 = vweird.f32 %v65
  %vm73 = vmor %vm71, %vm72
  %v74 = vsel %vm73, %v65, %v70
  %v75 = vmul.f32 %v41, %v64
  %v76 = vmul.f32 %v42, %v74
  %v77 = vperm.slane %v20, 0
  %v78 = vmul.f32 %v75, %v77
  %v79 = vmul.f32 %v76, %v77
  %v80 = vperm.slane %v20, 1
  %v81 = vadd.f32 %v78, %v80
  %v82 = vadd.f32 %v79, %v80
  %v83 = vld [vmem:[%s3] sm:$0xff]
  %v84 = vld [vmem:[%s3 + $0x8] sm:$0xff]
  %v85 = vld [vmem:[%s3 + $0x10] sm:$0xff]
  %v86 = vld [vmem:[%s3 + $0x18] sm:$0xff]
  %v87 = vperm.slane %v20, 2
  %v89 = vsel %vm25, %v81, 0
  %v92 = vsel %vm25, %v82, 0
  %v95 = vsel %vm25, %v83, 0
  %97 = vmatpush.xpose.msra.mxu0 0.0
  %98 = vmatpush.xpose.msra.mxu0 0.0
  %99 = vmatpush.xpose.msra.mxu0 0.0
  %100 = vmatpush.xpose.msra.mxu0 0.0
  %101 = vmatpush.xpose.msra.mxu0 0.0
  %102 = vmatpush.xpose.msra.mxu0 0.0
  %103 = vmatpush.xpose.msra.mxu0 0.0
  %104 = vmatpush.xpose.msra.mxu0 0.0
  %105 = vmatpush.xpose.msra.mxu0 0.0
  %106 = vmatpush.xpose.msra.mxu0 0.0
  %107 = vmatpush.xpose.msra.mxu0 0.0
  %108 = vmatpush.xpose.msra.mxu0 0.0
  %109 = vmatpush.xpose.msra.mxu0 0.0
  %110 = vmatpush.xpose.msra.mxu0 0.0
  %111 = vmatpush.xpose.msra.mxu0 0.0
  %112 = vmatpush.xpose.msra.mxu0 %v95
  %113 = vmatmul.f32.gmra.mxu0 %v89
  %v114 = vpop.f32.mrf.mxu0
  %v115 = vadd.f32 %v87, %v114
  %116 = vmatmul.f32.gmra.mxu0 %v92
  %v117 = vpop.f32.mrf.mxu0
  %v118 = vadd.f32 %v87, %v117
  %119 = vdwg.mxu0
  %v120 = vperm.slane %v20, 3
  %v122 = vsel %vm25, %v84, 0
  %124 = vmatpush.xpose.msra.mxu0 0.0
  %125 = vmatpush.xpose.msra.mxu0 0.0
  %126 = vmatpush.xpose.msra.mxu0 0.0
  %127 = vmatpush.xpose.msra.mxu0 0.0
  %128 = vmatpush.xpose.msra.mxu0 0.0
  %129 = vmatpush.xpose.msra.mxu0 0.0
  %130 = vmatpush.xpose.msra.mxu0 0.0
  %131 = vmatpush.xpose.msra.mxu0 0.0
  %132 = vmatpush.xpose.msra.mxu0 0.0
  %133 = vmatpush.xpose.msra.mxu0 0.0
  %134 = vmatpush.xpose.msra.mxu0 0.0
  %135 = vmatpush.xpose.msra.mxu0 0.0
  %136 = vmatpush.xpose.msra.mxu0 0.0
  %137 = vmatpush.xpose.msra.mxu0 0.0
  %138 = vmatpush.xpose.msra.mxu0 0.0
  %139 = vmatpush.xpose.msra.mxu0 %v122
  %140 = vmatmul.f32.gmra.mxu0 %v89
  %v141 = vpop.f32.mrf.mxu0
  %v142 = vadd.f32 %v120, %v141
  %143 = vmatmul.f32.gmra.mxu0 %v92
  %v144 = vpop.f32.mrf.mxu0
  %v145 = vadd.f32 %v120, %v144
  %146 = vdwg.mxu0
  %v147 = vperm.slane %v20, 4
  %v149 = vsel %vm25, %v85, 0
  %151 = vmatpush.xpose.msra.mxu0 0.0
  %152 = vmatpush.xpose.msra.mxu0 0.0
  %153 = vmatpush.xpose.msra.mxu0 0.0
  %154 = vmatpush.xpose.msra.mxu0 0.0
  %155 = vmatpush.xpose.msra.mxu0 0.0
  %156 = vmatpush.xpose.msra.mxu0 0.0
  %157 = vmatpush.xpose.msra.mxu0 0.0
  %158 = vmatpush.xpose.msra.mxu0 0.0
  %159 = vmatpush.xpose.msra.mxu0 0.0
  %160 = vmatpush.xpose.msra.mxu0 0.0
  %161 = vmatpush.xpose.msra.mxu0 0.0
  %162 = vmatpush.xpose.msra.mxu0 0.0
  %163 = vmatpush.xpose.msra.mxu0 0.0
  %164 = vmatpush.xpose.msra.mxu0 0.0
  %165 = vmatpush.xpose.msra.mxu0 0.0
  %166 = vmatpush.xpose.msra.mxu0 %v149
  %167 = vmatmul.f32.gmra.mxu0 %v89
  %v168 = vpop.f32.mrf.mxu0
  %v169 = vadd.f32 %v147, %v168
  %170 = vmatmul.f32.gmra.mxu0 %v92
  %v171 = vpop.f32.mrf.mxu0
  %v172 = vadd.f32 %v147, %v171
  %173 = vdwg.mxu0
  %v174 = vperm.slane %v20, 5
  %v176 = vsel %vm25, %v86, 0
  %178 = vmatpush.xpose.msra.mxu0 0.0
  %179 = vmatpush.xpose.msra.mxu0 0.0
  %180 = vmatpush.xpose.msra.mxu0 0.0
  %181 = vmatpush.xpose.msra.mxu0 0.0
  %182 = vmatpush.xpose.msra.mxu0 0.0
  %183 = vmatpush.xpose.msra.mxu0 0.0
  %184 = vmatpush.xpose.msra.mxu0 0.0
  %185 = vmatpush.xpose.msra.mxu0 0.0
  %186 = vmatpush.xpose.msra.mxu0 0.0
  %187 = vmatpush.xpose.msra.mxu0 0.0
  %188 = vmatpush.xpose.msra.mxu0 0.0
  %189 = vmatpush.xpose.msra.mxu0 0.0
  %190 = vmatpush.xpose.msra.mxu0 0.0
  %191 = vmatpush.xpose.msra.mxu0 0.0
  %192 = vmatpush.xpose.msra.mxu0 0.0
  %193 = vmatpush.xpose.msra.mxu0 %v176
  %194 = vmatmul.f32.gmra.mxu0 %v89
  %v195 = vpop.f32.mrf.mxu0
  %v196 = vadd.f32 %v174, %v195
  %197 = vmatmul.f32.gmra.mxu0 %v92
  %v198 = vpop.f32.mrf.mxu0
  %v199 = vadd.f32 %v174, %v198
  %200 = vdwg.mxu0
  %v201 = vld [vmem:[%s1] sm:$0x3]
  %v202 = vmul.f32 %v201, -1e+09
  %v204 = vrot.slane %v202, 1
  %v205 = vmul.f32 %v115, 0.35355338
  %v206 = vmul.f32 %v118, 0.35355338
  %v207 = vmul.f32 %v142, 0.35355338
  %v208 = vmul.f32 %v145, 0.35355338
  %v209 = vmul.f32 %v169, 0.35355338
  %v210 = vmul.f32 %v172, 0.35355338
  %v211 = vmul.f32 %v196, 0.35355338
  %v212 = vmul.f32 %v199, 0.35355338
  %v213 = vperm.slane %v202, 0
  %v214 = vperm.slane %v204, 0
  %vm217 = vcmask 64512
  %v219 = vsel %vm217, %v205, 0
  %v222 = vsel %vm217, %v115, 0
  %224 = vmatpush.xpose.msra.mxu0 0.0
  %225 = vmatpush.xpose.msra.mxu0 0.0
  %226 = vmatpush.xpose.msra.mxu0 0.0
  %227 = vmatpush.xpose.msra.mxu0 0.0
  %228 = vmatpush.xpose.msra.mxu0 0.0
  %229 = vmatpush.xpose.msra.mxu0 0.0
  %230 = vmatpush.xpose.msra.mxu0 0.0
  %231 = vmatpush.xpose.msra.mxu0 0.0
  %232 = vmatpush.xpose.msra.mxu0 0.0
  %233 = vmatpush.xpose.msra.mxu0 0.0
  %234 = vmatpush.xpose.msra.mxu0 0.0
  %235 = vmatpush.xpose.msra.mxu0 0.0
  %236 = vmatpush.xpose.msra.mxu0 0.0
  %237 = vmatpush.xpose.msra.mxu0 0.0
  %238 = vmatpush.xpose.msra.mxu0 0.0
  %239 = vmatpush.xpose.msra.mxu0 %v222
  %240 = vmatmul.f32.gmra.mxu0 %v219
  %v241 = vpop.f32.mrf.mxu0
  %v242 = vadd.f32 %v213, %v241
  %243 = vdwg.mxu0
  %v245 = vsel %vm217, %v206, 0
  %v248 = vsel %vm217, %v118, 0
  %250 = vmatpush.xpose.msra.mxu0 0.0
  %251 = vmatpush.xpose.msra.mxu0 0.0
  %252 = vmatpush.xpose.msra.mxu0 0.0
  %253 = vmatpush.xpose.msra.mxu0 0.0
  %254 = vmatpush.xpose.msra.mxu0 0.0
  %255 = vmatpush.xpose.msra.mxu0 0.0
  %256 = vmatpush.xpose.msra.mxu0 0.0
  %257 = vmatpush.xpose.msra.mxu0 0.0
  %258 = vmatpush.xpose.msra.mxu0 0.0
  %259 = vmatpush.xpose.msra.mxu0 0.0
  %260 = vmatpush.xpose.msra.mxu0 0.0
  %261 = vmatpush.xpose.msra.mxu0 0.0
  %262 = vmatpush.xpose.msra.mxu0 0.0
  %263 = vmatpush.xpose.msra.mxu0 0.0
  %264 = vmatpush.xpose.msra.mxu0 0.0
  %265 = vmatpush.xpose.msra.mxu0 %v248
  %266 = vmatmul.f32.gmra.mxu0 %v245
  %v267 = vpop.f32.mrf.mxu0
  %v268 = vadd.f32 %v214, %v267
  %269 = vdwg.mxu0
  %v271 = vsel %vm217, %v207, 0
  %v274 = vsel %vm217, %v142, 0
  %276 = vmatpush.xpose.msra.mxu0 0.0
  %277 = vmatpush.xpose.msra.mxu0 0.0
  %278 = vmatpush.xpose.msra.mxu0 0.0
  %279 = vmatpush.xpose.msra.mxu0 0.0
  %280 = vmatpush.xpose.msra.mxu0 0.0
  %281 = vmatpush.xpose.msra.mxu0 0.0
  %282 = vmatpush.xpose.msra.mxu0 0.0
  %283 = vmatpush.xpose.msra.mxu0 0.0
  %284 = vmatpush.xpose.msra.mxu0 0.0
  %285 = vmatpush.xpose.msra.mxu0 0.0
  %286 = vmatpush.xpose.msra.mxu0 0.0
  %287 = vmatpush.xpose.msra.mxu0 0.0
  %288 = vmatpush.xpose.msra.mxu0 0.0
  %289 = vmatpush.xpose.msra.mxu0 0.0
  %290 = vmatpush.xpose.msra.mxu0 0.0
  %291 = vmatpush.xpose.msra.mxu0 %v274
  %292 = vmatmul.f32.gmra.mxu0 %v271
  %v293 = vpop.f32.mrf.mxu0
  %v294 = vadd.f32 %v213, %v293
  %295 = vdwg.mxu0
  %v297 = vsel %vm217, %v208, 0
  %v300 = vsel %vm217, %v145, 0
  %302 = vmatpush.xpose.msra.mxu0 0.0
  %303 = vmatpush.xpose.msra.mxu0 0.0
  %304 = vmatpush.xpose.msra.mxu0 0.0
  %305 = vmatpush.xpose.msra.mxu0 0.0
  %306 = vmatpush.xpose.msra.mxu0 0.0
  %307 = vmatpush.xpose.msra.mxu0 0.0
  %308 = vmatpush.xpose.msra.mxu0 0.0
  %309 = vmatpush.xpose.msra.mxu0 0.0
  %310 = vmatpush.xpose.msra.mxu0 0.0
  %311 = vmatpush.xpose.msra.mxu0 0.0
  %312 = vmatpush.xpose.msra.mxu0 0.0
  %313 = vmatpush.xpose.msra.mxu0 0.0
  %314 = vmatpush.xpose.msra.mxu0 0.0
  %315 = vmatpush.xpose.msra.mxu0 0.0
  %316 = vmatpush.xpose.msra.mxu0 0.0
  %317 = vmatpush.xpose.msra.mxu0 %v300
  %318 = vmatmul.f32.gmra.mxu0 %v297
  %v319 = vpop.f32.mrf.mxu0
  %v320 = vadd.f32 %v214, %v319
  %321 = vdwg.mxu0
  %v323 = vsel %vm217, %v209, 0
  %v326 = vsel %vm217, %v169, 0
  %328 = vmatpush.xpose.msra.mxu0 0.0
  %329 = vmatpush.xpose.msra.mxu0 0.0
  %330 = vmatpush.xpose.msra.mxu0 0.0
  %331 = vmatpush.xpose.msra.mxu0 0.0
  %332 = vmatpush.xpose.msra.mxu0 0.0
  %333 = vmatpush.xpose.msra.mxu0 0.0
  %334 = vmatpush.xpose.msra.mxu0 0.0
  %335 = vmatpush.xpose.msra.mxu0 0.0
  %336 = vmatpush.xpose.msra.mxu0 0.0
  %337 = vmatpush.xpose.msra.mxu0 0.0
  %338 = vmatpush.xpose.msra.mxu0 0.0
  %339 = vmatpush.xpose.msra.mxu0 0.0
  %340 = vmatpush.xpose.msra.mxu0 0.0
  %341 = vmatpush.xpose.msra.mxu0 0.0
  %342 = vmatpush.xpose.msra.mxu0 0.0
  %343 = vmatpush.xpose.msra.mxu0 %v326
  %344 = vmatmul.f32.gmra.mxu0 %v323
  %v345 = vpop.f32.mrf.mxu0
  %v346 = vadd.f32 %v213, %v345
  %347 = vdwg.mxu0
  %v349 = vsel %vm217, %v210, 0
  %v352 = vsel %vm217, %v172, 0
  %354 = vmatpush.xpose.msra.mxu0 0.0
  %355 = vmatpush.xpose.msra.mxu0 0.0
  %356 = vmatpush.xpose.msra.mxu0 0.0
  %357 = vmatpush.xpose.msra.mxu0 0.0
  %358 = vmatpush.xpose.msra.mxu0 0.0
  %359 = vmatpush.xpose.msra.mxu0 0.0
  %360 = vmatpush.xpose.msra.mxu0 0.0
  %361 = vmatpush.xpose.msra.mxu0 0.0
  %362 = vmatpush.xpose.msra.mxu0 0.0
  %363 = vmatpush.xpose.msra.mxu0 0.0
  %364 = vmatpush.xpose.msra.mxu0 0.0
  %365 = vmatpush.xpose.msra.mxu0 0.0
  %366 = vmatpush.xpose.msra.mxu0 0.0
  %367 = vmatpush.xpose.msra.mxu0 0.0
  %368 = vmatpush.xpose.msra.mxu0 0.0
  %369 = vmatpush.xpose.msra.mxu0 %v352
  %370 = vmatmul.f32.gmra.mxu0 %v349
  %v371 = vpop.f32.mrf.mxu0
  %v372 = vadd.f32 %v214, %v371
  %373 = vdwg.mxu0
  %v375 = vsel %vm217, %v211, 0
  %v378 = vsel %vm217, %v196, 0
  %380 = vmatpush.xpose.msra.mxu0 0.0
  %381 = vmatpush.xpose.msra.mxu0 0.0
  %382 = vmatpush.xpose.msra.mxu0 0.0
  %383 = vmatpush.xpose.msra.mxu0 0.0
  %384 = vmatpush.xpose.msra.mxu0 0.0
  %385 = vmatpush.xpose.msra.mxu0 0.0
  %386 = vmatpush.xpose.msra.mxu0 0.0
  %387 = vmatpush.xpose.msra.mxu0 0.0
  %388 = vmatpush.xpose.msra.mxu0 0.0
  %389 = vmatpush.xpose.msra.mxu0 0.0
  %390 = vmatpush.xpose.msra.mxu0 0.0
  %391 = vmatpush.xpose.msra.mxu0 0.0
  %392 = vmatpush.xpose.msra.mxu0 0.0
  %393 = vmatpush.xpose.msra.mxu0 0.0
  %394 = vmatpush.xpose.msra.mxu0 0.0
  %395 = vmatpush.xpose.msra.mxu0 %v378
  %396 = vmatmul.f32.gmra.mxu0 %v375
  %v397 = vpop.f32.mrf.mxu0
  %v398 = vadd.f32 %v213, %v397
  %399 = vdwg.mxu0
  %v401 = vsel %vm217, %v212, 0
  %v404 = vsel %vm217, %v199, 0
  %406 = vmatpush.xpose.msra.mxu0 0.0
  %407 = vmatpush.xpose.msra.mxu0 0.0
  %408 = vmatpush.xpose.msra.mxu0 0.0
  %409 = vmatpush.xpose.msra.mxu0 0.0
  %410 = vmatpush.xpose.msra.mxu0 0.0
  %411 = vmatpush.xpose.msra.mxu0 0.0
  %412 = vmatpush.xpose.msra.mxu0 0.0
  %413 = vmatpush.xpose.msra.mxu0 0.0
  %414 = vmatpush.xpose.msra.mxu0 0.0
  %415 = vmatpush.xpose.msra.mxu0 0.0
  %416 = vmatpush.xpose.msra.mxu0 0.0
  %417 = vmatpush.xpose.msra.mxu0 0.0
  %418 = vmatpush.xpose.msra.mxu0 0.0
  %419 = vmatpush.xpose.msra.mxu0 0.0
  %420 = vmatpush.xpose.msra.mxu0 0.0
  %421 = vmatpush.xpose.msra.mxu0 %v404
  %422 = vmatmul.f32.gmra.mxu0 %v401
  %v423 = vpop.f32.mrf.mxu0
  %v424 = vadd.f32 %v214, %v423
  %425 = vdwg.mxu0
  %v426 = vsel %vm217, %v242, -inf
  %427 = vmax.xlane.f32.xlu0 %v426
  %v428 = vpop.xlane.xlu0 %427
  %v429 = vsel %vm217, %v268, -inf
  %430 = vmax.xlane.f32.xlu0 %v429
  %v431 = vpop.xlane.xlu0 %430
  %v432 = vsel %vm217, %v294, -inf
  %433 = vmax.xlane.f32.xlu0 %v432
  %v434 = vpop.xlane.xlu0 %433
  %v435 = vsel %vm217, %v320, -inf
  %436 = vmax.xlane.f32.xlu0 %v435
  %v437 = vpop.xlane.xlu0 %436
  %v438 = vsel %vm217, %v346, -inf
  %439 = vmax.xlane.f32.xlu0 %v438
  %v440 = vpop.xlane.xlu0 %439
  %v441 = vsel %vm217, %v372, -inf
  %442 = vmax.xlane.f32.xlu0 %v441
  %v443 = vpop.xlane.xlu0 %442
  %v444 = vsel %vm217, %v398, -inf
  %445 = vmax.xlane.f32.xlu0 %v444
  %v446 = vpop.xlane.xlu0 %445
  %v447 = vsel %vm217, %v424, -inf
  %448 = vmax.xlane.f32.xlu0 %v447
  %v449 = vpop.xlane.xlu0 %448
  %v450 = vsub.f32 %v242, %v428
  %v451 = vsub.f32 %v268, %v431
  %v452 = vsub.f32 %v294, %v434
  %v453 = vsub.f32 %v320, %v437
  %v454 = vsub.f32 %v346, %v440
  %v455 = vsub.f32 %v372, %v443
  %v456 = vsub.f32 %v398, %v446
  %v457 = vsub.f32 %v424, %v449
  %v458 = vmul.f32 %v450, 1.442695
  %v459 = vpow.pop %v458
  %v460 = vmul.f32 %v451, 1.442695
  %v461 = vpow.pop %v460
  %v462 = vmul.f32 %v452, 1.442695
  %v463 = vpow.pop %v462
  %v464 = vmul.f32 %v453, 1.442695
  %v465 = vpow.pop %v464
  %v466 = vmul.f32 %v454, 1.442695
  %v467 = vpow.pop %v466
  %v468 = vmul.f32 %v455, 1.442695
  %v469 = vpow.pop %v468
  %v470 = vmul.f32 %v456, 1.442695
  %v471 = vpow.pop %v470
  %v472 = vmul.f32 %v457, 1.442695
  %v473 = vpow.pop %v472
  %v474 = vsel %vm217, %v459, 0.0
  %475 = vadd.xlane.f32.xlu0 %v474
  %v476 = vpop.xlane.xlu0 %475
  %v477 = vsel %vm217, %v461, 0.0
  %478 = vadd.xlane.f32.xlu0 %v477
  %v479 = vpop.xlane.xlu0 %478
  %v480 = vsel %vm217, %v463, 0.0
  %481 = vadd.xlane.f32.xlu0 %v480
  %v482 = vpop.xlane.xlu0 %481
  %v483 = vsel %vm217, %v465, 0.0
  %484 = vadd.xlane.f32.xlu0 %v483
  %v485 = vpop.xlane.xlu0 %484
  %v486 = vsel %vm217, %v467, 0.0
  %487 = vadd.xlane.f32.xlu0 %v486
  %v488 = vpop.xlane.xlu0 %487
  %v489 = vsel %vm217, %v469, 0.0
  %490 = vadd.xlane.f32.xlu0 %v489
  %v491 = vpop.xlane.xlu0 %490
  %v492 = vsel %vm217, %v471, 0.0
  %493 = vadd.xlane.f32.xlu0 %v492
  %v494 = vpop.xlane.xlu0 %493
  %v495 = vsel %vm217, %v473, 0.0
  %496 = vadd.xlane.f32.xlu0 %v495
  %v497 = vpop.xlane.xlu0 %496
  %v498 = vrcp.pop %v476
  %v499 = vrcp.pop %v479
  %v500 = vrcp.pop %v482
  %v501 = vrcp.pop %v485
  %v502 = vrcp.pop %v488
  %v503 = vrcp.pop %v491
  %v504 = vrcp.pop %v494
  %v505 = vrcp.pop %v497
  %v506 = vmul.f32 %v459, %v498
  %v507 = vmul.f32 %v461, %v499
  %v508 = vmul.f32 %v463, %v500
  %v509 = vmul.f32 %v465, %v501
  %v510 = vmul.f32 %v467, %v502
  %v511 = vmul.f32 %v469, %v503
  %v512 = vmul.f32 %v471, %v504
  %v513 = vmul.f32 %v473, %v505
  %v515 = vsel %vm217, %v506, 0
  %517 = vmatpush.msra.mxu0 0.0
  %518 = vmatpush.msra.mxu0 0.0
  %519 = vmatpush.msra.mxu0 0.0
  %520 = vmatpush.msra.mxu0 0.0
  %521 = vmatpush.msra.mxu0 0.0
  %522 = vmatpush.msra.mxu0 0.0
  %523 = vmatpush.msra.mxu0 0.0
  %524 = vmatpush.msra.mxu0 0.0
  %525 = vmatpush.msra.mxu0 0.0
  %526 = vmatpush.msra.mxu0 0.0
  %527 = vmatpush.msra.mxu0 0.0
  %528 = vmatpush.msra.mxu0 0.0
  %529 = vmatpush.msra.mxu0 0.0
  %530 = vmatpush.msra.mxu0 0.0
  %531 = vmatpush.msra.mxu0 0.0
  %532 = vmatpush.msra.mxu0 %v115
  %533 = vmatmul.f32.gmra.mxu0 %v515
  %v534 = vpop.f32.mrf.mxu0
  %v535 = vadd.f32 0.0, %v534
  %536 = vdwg.mxu0
  %v538 = vsel %vm217, %v507, 0
  %540 = vmatpush.msra.mxu0 0.0
  %541 = vmatpush.msra.mxu0 0.0
  %542 = vmatpush.msra.mxu0 0.0
  %543 = vmatpush.msra.mxu0 0.0
  %544 = vmatpush.msra.mxu0 0.0
  %545 = vmatpush.msra.mxu0 0.0
  %546 = vmatpush.msra.mxu0 0.0
  %547 = vmatpush.msra.mxu0 0.0
  %548 = vmatpush.msra.mxu0 0.0
  %549 = vmatpush.msra.mxu0 0.0
  %550 = vmatpush.msra.mxu0 0.0
  %551 = vmatpush.msra.mxu0 0.0
  %552 = vmatpush.msra.mxu0 0.0
  %553 = vmatpush.msra.mxu0 0.0
  %554 = vmatpush.msra.mxu0 0.0
  %555 = vmatpush.msra.mxu0 %v118
  %556 = vmatmul.f32.gmra.mxu0 %v538
  %v557 = vpop.f32.mrf.mxu0
  %v558 = vadd.f32 0.0, %v557
  %559 = vdwg.mxu0
  %v561 = vsel %vm217, %v508, 0
  %563 = vmatpush.msra.mxu0 0.0
  %564 = vmatpush.msra.mxu0 0.0
  %565 = vmatpush.msra.mxu0 0.0
  %566 = vmatpush.msra.mxu0 0.0
  %567 = vmatpush.msra.mxu0 0.0
  %568 = vmatpush.msra.mxu0 0.0
  %569 = vmatpush.msra.mxu0 0.0
  %570 = vmatpush.msra.mxu0 0.0
  %571 = vmatpush.msra.mxu0 0.0
  %572 = vmatpush.msra.mxu0 0.0
  %573 = vmatpush.msra.mxu0 0.0
  %574 = vmatpush.msra.mxu0 0.0
  %575 = vmatpush.msra.mxu0 0.0
  %576 = vmatpush.msra.mxu0 0.0
  %577 = vmatpush.msra.mxu0 0.0
  %578 = vmatpush.msra.mxu0 %v142
  %579 = vmatmul.f32.gmra.mxu0 %v561
  %v580 = vpop.f32.mrf.mxu0
  %v581 = vadd.f32 0.0, %v580
  %582 = vdwg.mxu0
  %v584 = vsel %vm217, %v509, 0
  %586 = vmatpush.msra.mxu0 0.0
  %587 = vmatpush.msra.mxu0 0.0
  %588 = vmatpush.msra.mxu0 0.0
  %589 = vmatpush.msra.mxu0 0.0
  %590 = vmatpush.msra.mxu0 0.0
  %591 = vmatpush.msra.mxu0 0.0
  %592 = vmatpush.msra.mxu0 0.0
  %593 = vmatpush.msra.mxu0 0.0
  %594 = vmatpush.msra.mxu0 0.0
  %595 = vmatpush.msra.mxu0 0.0
  %596 = vmatpush.msra.mxu0 0.0
  %597 = vmatpush.msra.mxu0 0.0
  %598 = vmatpush.msra.mxu0 0.0
  %599 = vmatpush.msra.mxu0 0.0
  %600 = vmatpush.msra.mxu0 0.0
  %601 = vmatpush.msra.mxu0 %v145
  %602 = vmatmul.f32.gmra.mxu0 %v584
  %v603 = vpop.f32.mrf.mxu0
  %v604 = vadd.f32 0.0, %v603
  %605 = vdwg.mxu0
  %v607 = vsel %vm217, %v510, 0
  %609 = vmatpush.msra.mxu0 0.0
  %610 = vmatpush.msra.mxu0 0.0
  %611 = vmatpush.msra.mxu0 0.0
  %612 = vmatpush.msra.mxu0 0.0
  %613 = vmatpush.msra.mxu0 0.0
  %614 = vmatpush.msra.mxu0 0.0
  %615 = vmatpush.msra.mxu0 0.0
  %616 = vmatpush.msra.mxu0 0.0
  %617 = vmatpush.msra.mxu0 0.0
  %618 = vmatpush.msra.mxu0 0.0
  %619 = vmatpush.msra.mxu0 0.0
  %620 = vmatpush.msra.mxu0 0.0
  %621 = vmatpush.msra.mxu0 0.0
  %622 = vmatpush.msra.mxu0 0.0
  %623 = vmatpush.msra.mxu0 0.0
  %624 = vmatpush.msra.mxu0 %v169
  %625 = vmatmul.f32.gmra.mxu0 %v607
  %v626 = vpop.f32.mrf.mxu0
  %v627 = vadd.f32 0.0, %v626
  %628 = vdwg.mxu0
  %v630 = vsel %vm217, %v511, 0
  %632 = vmatpush.msra.mxu0 0.0
  %633 = vmatpush.msra.mxu0 0.0
  %634 = vmatpush.msra.mxu0 0.0
  %635 = vmatpush.msra.mxu0 0.0
  %636 = vmatpush.msra.mxu0 0.0
  %637 = vmatpush.msra.mxu0 0.0
  %638 = vmatpush.msra.mxu0 0.0
  %639 = vmatpush.msra.mxu0 0.0
  %640 = vmatpush.msra.mxu0 0.0
  %641 = vmatpush.msra.mxu0 0.0
  %642 = vmatpush.msra.mxu0 0.0
  %643 = vmatpush.msra.mxu0 0.0
  %644 = vmatpush.msra.mxu0 0.0
  %645 = vmatpush.msra.mxu0 0.0
  %646 = vmatpush.msra.mxu0 0.0
  %647 = vmatpush.msra.mxu0 %v172
  %648 = vmatmul.f32.gmra.mxu0 %v630
  %v649 = vpop.f32.mrf.mxu0
  %v650 = vadd.f32 0.0, %v649
  %651 = vdwg.mxu0
  %v653 = vsel %vm217, %v512, 0
  %655 = vmatpush.msra.mxu0 0.0
  %656 = vmatpush.msra.mxu0 0.0
  %657 = vmatpush.msra.mxu0 0.0
  %658 = vmatpush.msra.mxu0 0.0
  %659 = vmatpush.msra.mxu0 0.0
  %660 = vmatpush.msra.mxu0 0.0
  %661 = vmatpush.msra.mxu0 0.0
  %662 = vmatpush.msra.mxu0 0.0
  %663 = vmatpush.msra.mxu0 0.0
  %664 = vmatpush.msra.mxu0 0.0
  %665 = vmatpush.msra.mxu0 0.0
  %666 = vmatpush.msra.mxu0 0.0
  %667 = vmatpush.msra.mxu0 0.0
  %668 = vmatpush.msra.mxu0 0.0
  %669 = vmatpush.msra.mxu0 0.0
  %670 = vmatpush.msra.mxu0 %v196
  %671 = vmatmul.f32.gmra.mxu0 %v653
  %v672 = vpop.f32.mrf.mxu0
  %v673 = vadd.f32 0.0, %v672
  %674 = vdwg.mxu0
  %v676 = vsel %vm217, %v513, 0
  %678 = vmatpush.msra.mxu0 0.0
  %679 = vmatpush.msra.mxu0 0.0
  %680 = vmatpush.msra.mxu0 0.0
  %681 = vmatpush.msra.mxu0 0.0
  %682 = vmatpush.msra.mxu0 0.0
  %683 = vmatpush.msra.mxu0 0.0
  %684 = vmatpush.msra.mxu0 0.0
  %685 = vmatpush.msra.mxu0 0.0
  %686 = vmatpush.msra.mxu0 0.0
  %687 = vmatpush.msra.mxu0 0.0
  %688 = vmatpush.msra.mxu0 0.0
  %689 = vmatpush.msra.mxu0 0.0
  %690 = vmatpush.msra.mxu0 0.0
  %691 = vmatpush.msra.mxu0 0.0
  %692 = vmatpush.msra.mxu0 0.0
  %693 = vmatpush.msra.mxu0 %v199
  %694 = vmatmul.f32.gmra.mxu0 %v676
  %v695 = vpop.f32.mrf.mxu0
  %v696 = vadd.f32 0.0, %v695
  %697 = vdwg.mxu0
  %s698 = scalar_lea.vmem %s3, 128
  %v699 = vld [vmem:[%s698] sm:$0xff]
  %v700 = vld [vmem:[%s698 + $0x8] sm:$0xff]
  %v701 = vld [vmem:[%s698 + $0x10] sm:$0xff]
  %v702 = vld [vmem:[%s698 + $0x18] sm:$0xff]
  %v704 = vsel %vm217, %v581, 0
  %v707 = vsel %vm217, %v604, 0
  %709 = vmatpush.msra.mxu0 0.0
  %710 = vmatpush.msra.mxu0 0.0
  %711 = vmatpush.msra.mxu0 0.0
  %712 = vmatpush.msra.mxu0 0.0
  %713 = vmatpush.msra.mxu0 0.0
  %714 = vmatpush.msra.mxu0 0.0
  %715 = vmatpush.msra.mxu0 0.0
  %716 = vmatpush.msra.mxu0 0.0
  %717 = vmatpush.msra.mxu0 0.0
  %718 = vmatpush.msra.mxu0 0.0
  %719 = vmatpush.msra.mxu0 0.0
  %720 = vmatpush.msra.mxu0 0.0
  %721 = vmatpush.msra.mxu0 0.0
  %722 = vmatpush.msra.mxu0 0.0
  %723 = vmatpush.msra.mxu0 0.0
  %724 = vmatpush.msra.mxu0 %v700
  %725 = vmatmul.f32.gmra.mxu0 %v704
  %v726 = vpop.f32.mrf.mxu0
  %v727 = vadd.f32 0.0, %v726
  %728 = vmatmul.f32.gmra.mxu0 %v707
  %v729 = vpop.f32.mrf.mxu0
  %v730 = vadd.f32 0.0, %v729
  %731 = vdwg.mxu0
  %v733 = vsel %vm217, %v535, 0
  %v736 = vsel %vm217, %v558, 0
  %738 = vmatpush.msra.mxu0 0.0
  %739 = vmatpush.msra.mxu0 0.0
  %740 = vmatpush.msra.mxu0 0.0
  %741 = vmatpush.msra.mxu0 0.0
  %742 = vmatpush.msra.mxu0 0.0
  %743 = vmatpush.msra.mxu0 0.0
  %744 = vmatpush.msra.mxu0 0.0
  %745 = vmatpush.msra.mxu0 0.0
  %746 = vmatpush.msra.mxu0 0.0
  %747 = vmatpush.msra.mxu0 0.0
  %748 = vmatpush.msra.mxu0 0.0
  %749 = vmatpush.msra.mxu0 0.0
  %750 = vmatpush.msra.mxu0 0.0
  %751 = vmatpush.msra.mxu0 0.0
  %752 = vmatpush.msra.mxu0 0.0
  %753 = vmatpush.msra.mxu0 %v699
  %754 = vmatmul.f32.gmra.mxu0 %v733
  %v755 = vpop.f32.mrf.mxu0
  %v756 = vadd.f32 %v727, %v755
  %757 = vmatmul.f32.gmra.mxu0 %v736
  %v758 = vpop.f32.mrf.mxu0
  %v759 = vadd.f32 %v730, %v758
  %760 = vdwg.mxu0
  %v762 = vsel %vm217, %v627, 0
  %v765 = vsel %vm217, %v650, 0
  %767 = vmatpush.msra.mxu0 0.0
  %768 = vmatpush.msra.mxu0 0.0
  %769 = vmatpush.msra.mxu0 0.0
  %770 = vmatpush.msra.mxu0 0.0
  %771 = vmatpush.msra.mxu0 0.0
  %772 = vmatpush.msra.mxu0 0.0
  %773 = vmatpush.msra.mxu0 0.0
  %774 = vmatpush.msra.mxu0 0.0
  %775 = vmatpush.msra.mxu0 0.0
  %776 = vmatpush.msra.mxu0 0.0
  %777 = vmatpush.msra.mxu0 0.0
  %778 = vmatpush.msra.mxu0 0.0
  %779 = vmatpush.msra.mxu0 0.0
  %780 = vmatpush.msra.mxu0 0.0
  %781 = vmatpush.msra.mxu0 0.0
  %782 = vmatpush.msra.mxu0 %v701
  %783 = vmatmul.f32.gmra.mxu0 %v762
  %v784 = vpop.f32.mrf.mxu0
  %v785 = vadd.f32 0.0, %v784
  %786 = vmatmul.f32.gmra.mxu0 %v765
  %v787 = vpop.f32.mrf.mxu0
  %v788 = vadd.f32 0.0, %v787
  %789 = vdwg.mxu0
  %v790 = vadd.f32 %v756, %v785
  %v791 = vadd.f32 %v759, %v788
  %v793 = vsel %vm217, %v673, 0
  %v796 = vsel %vm217, %v696, 0
  %798 = vmatpush.msra.mxu0 0.0
  %799 = vmatpush.msra.mxu0 0.0
  %800 = vmatpush.msra.mxu0 0.0
  %801 = vmatpush.msra.mxu0 0.0
  %802 = vmatpush.msra.mxu0 0.0
  %803 = vmatpush.msra.mxu0 0.0
  %804 = vmatpush.msra.mxu0 0.0
  %805 = vmatpush.msra.mxu0 0.0
  %806 = vmatpush.msra.mxu0 0.0
  %807 = vmatpush.msra.mxu0 0.0
  %808 = vmatpush.msra.mxu0 0.0
  %809 = vmatpush.msra.mxu0 0.0
  %810 = vmatpush.msra.mxu0 0.0
  %811 = vmatpush.msra.mxu0 0.0
  %812 = vmatpush.msra.mxu0 0.0
  %813 = vmatpush.msra.mxu0 %v702
  %814 = vmatmul.f32.gmra.mxu0 %v793
  %v815 = vpop.f32.mrf.mxu0
  %v816 = vadd.f32 0.0, %v815
  %817 = vmatmul.f32.gmra.mxu0 %v796
  %v818 = vpop.f32.mrf.mxu0
  %v819 = vadd.f32 0.0, %v818
  %820 = vdwg.mxu0
  %v821 = vadd.f32 %v790, %v816
  %v822 = vadd.f32 %v791, %v819
  %v823 = vperm.slane %v20, 6
  %v824 = vadd.f32 %v821, %v823
  %v825 = vadd.f32 %v822, %v823
  %v826 = vadd.f32 %v824, %v81
  %v827 = vadd.f32 %v825, %v82
  %v828 = vsel %vm25, %v826, 0.0
  %829 = vadd.xlane.f32.xlu0 %v828
  %v830 = vpop.xlane.xlu0 %829
  %v831 = vsel %vm25, %v827, 0.0
  %832 = vadd.xlane.f32.xlu0 %v831
  %v833 = vpop.xlane.xlu0 %832
  %v834 = vmul.f32 %v830, %v38
  %v835 = vmul.f32 %v833, %v38
  %v836 = vsub.f32 %v826, %v834
  %v837 = vsub.f32 %v827, %v835
  %v838 = vmul.f32 %v836, %v836
  %v839 = vmul.f32 %v837, %v837
  %v840 = vsel %vm25, %v838, 0.0
  %841 = vadd.xlane.f32.xlu0 %v840
  %v842 = vpop.xlane.xlu0 %841
  %v843 = vsel %vm25, %v839, 0.0
  %844 = vadd.xlane.f32.xlu0 %v843
  %v845 = vpop.xlane.xlu0 %844
  %v846 = vmul.f32 %v842, %v38
  %v847 = vmul.f32 %v845, %v38
  %v848 = vadd.f32 %v846, 1e-05
  %v849 = vadd.f32 %v847, 1e-05
  %v850 = vrsqrt.pop %v848
  %v851 = vmul.f32 %v850, %v848
  %v852 = vmul.f32 %v851, %v850
  %v853 = vmul.f32 0.5, %v852
  %v854 = vsub.f32 1.5, %v853
  %v855 = vmul.f32 %v850, %v854
  %vm856 = vweird.f32 %v848
  %vm857 = vweird.f32 %v850
  %vm858 = vmor %vm856, %vm857
  %v859 = vsel %vm858, %v850, %v855
  %v860 = vrsqrt.pop %v849
  %v861 = vmul.f32 %v860, %v849
  %v862 = vmul.f32 %v861, %v860
  %v863 = vmul.f32 0.5, %v862
  %v864 = vsub.f32 1.5, %v863
  %v865 = vmul.f32 %v860, %v864
  %vm866 = vweird.f32 %v849
  %vm867 = vweird.f32 %v860
  %vm868 = vmor %vm866, %vm867
  %v869 = vsel %vm868, %v860, %v865
  %v870 = vmul.f32 %v836, %v859
  %v871 = vmul.f32 %v837, %v869
  %v872 = vperm.slane %v20, 7
  %v873 = vmul.f32 %v870, %v872
  %v874 = vmul.f32 %v871, %v872
  %v875 = vperm.slane %v21, 0
  %v876 = vadd.f32 %v873, %v875
  %v877 = vadd.f32 %v874, %v875
  %s878 = scalar_lea.vmem %s3, 512
  %v879 = vld [vmem:[%s878] sm:$0xff]
  %v880 = vld [vmem:[%s878 + $0x8] sm:$0xff]
  %v881 = vld [vmem:[%s878 + $0x10] sm:$0xff]
  %v882 = vld [vmem:[%s878 + $0x18] sm:$0xff]
  %v883 = vld [vmem:[%s878 + $0x20] sm:$0xff]
  %v884 = vld [vmem:[%s878 + $0x28] sm:$0xff]
  %v885 = vld [vmem:[%s878 + $0x30] sm:$0xff]
  %v886 = vld [vmem:[%s878 + $0x38] sm:$0xff]
  %s887 = scalar_lea.vmem %s3, 640
  %v888 = vld [vmem:[%s887] sm:$0xff]
  %v889 = vld [vmem:[%s887 + $0x8] sm:$0xff]
  %v890 = vld [vmem:[%s887 + $0x10] sm:$0xff]
  %v891 = vld [vmem:[%s887 + $0x18] sm:$0xff]
  %v892 = vld [vmem:[%s887 + $0x20] sm:$0xff]
  %v893 = vld [vmem:[%s887 + $0x28] sm:$0xff]
  %v894 = vld [vmem:[%s887 + $0x30] sm:$0xff]
  %v895 = vld [vmem:[%s887 + $0x38] sm:$0xff]
  %v896 = vperm.slane %v21, 1
  %v898 = vsel %vm25, %v876, 0
  %v901 = vsel %vm25, %v877, 0
  %v904 = vsel %vm25, %v879, 0
  %v907 = vsel %vm25, %v880, 0
  %v910 = vsel %vm25, %v881, 0
  %v913 = vsel %vm25, %v882, 0
  %v916 = vsel %vm25, %v883, 0
  %v919 = vsel %vm25, %v884, 0
  %v922 = vsel %vm25, %v885, 0
  %v925 = vsel %vm25, %v886, 0
  %927 = vmatpush.xpose.msra.mxu0 0.0
  %928 = vmatpush.xpose.msra.mxu0 0.0
  %929 = vmatpush.xpose.msra.mxu0 0.0
  %930 = vmatpush.xpose.msra.mxu0 0.0
  %931 = vmatpush.xpose.msra.mxu0 0.0
  %932 = vmatpush.xpose.msra.mxu0 0.0
  %933 = vmatpush.xpose.msra.mxu0 0.0
  %934 = vmatpush.xpose.msra.mxu0 0.0
  %935 = vmatpush.xpose.msra.mxu0 %v925
  %936 = vmatpush.xpose.msra.mxu0 %v922
  %937 = vmatpush.xpose.msra.mxu0 %v919
  %938 = vmatpush.xpose.msra.mxu0 %v916
  %939 = vmatpush.xpose.msra.mxu0 %v913
  %940 = vmatpush.xpose.msra.mxu0 %v910
  %941 = vmatpush.xpose.msra.mxu0 %v907
  %942 = vmatpush.xpose.msra.mxu0 %v904
  %943 = vmatmul.f32.gmra.mxu0 %v898
  %v944 = vpop.f32.mrf.mxu0
  %v945 = vadd.f32 %v896, %v944
  %946 = vmatmul.f32.gmra.mxu0 %v901
  %v947 = vpop.f32.mrf.mxu0
  %v948 = vadd.f32 %v896, %v947
  %949 = vdwg.mxu0
  %v950 = vmul.f32 %v945, 0.5
  %v951 = vmul.f32 %v948, 0.5
  %v952 = vmul.f32 %v945, 0.044715
  %v953 = vmul.f32 %v948, 0.044715
  %v954 = vmul.f32 %v952, %v945
  %v955 = vmul.f32 %v953, %v948
  %v956 = vmul.f32 %v954, %v945
  %v957 = vmul.f32 %v955, %v948
  %v958 = vadd.f32 %v945, %v956
  %v959 = vadd.f32 %v948, %v957
  %v960 = vmul.f32 %v958, 0.7978846
  %v961 = vmul.f32 %v959, 0.7978846
  %v962 = vtanh.pop %v960
  %v963 = vtanh.pop %v961
  %v964 = vadd.f32 %v962, 1.0
  %v965 = vadd.f32 %v963, 1.0
  %v966 = vmul.f32 %v950, %v964
  %v967 = vmul.f32 %v951, %v965
  %v968 = vperm.slane %v21, 2
  %vm969 = vcmask 523264
  %v971 = vsel %vm969, %v966, 0
  %v974 = vsel %vm969, %v967, 0
  %976 = vmatpush.msra.mxu0 0.0
  %977 = vmatpush.msra.mxu0 0.0
  %978 = vmatpush.msra.mxu0 0.0
  %979 = vmatpush.msra.mxu0 0.0
  %980 = vmatpush.msra.mxu0 0.0
  %981 = vmatpush.msra.mxu0 0.0
  %982 = vmatpush.msra.mxu0 0.0
  %983 = vmatpush.msra.mxu0 0.0
  %984 = vmatpush.msra.mxu0 %v895
  %985 = vmatpush.msra.mxu0 %v894
  %986 = vmatpush.msra.mxu0 %v893
  %987 = vmatpush.msra.mxu0 %v892
  %988 = vmatpush.msra.mxu0 %v891
  %989 = vmatpush.msra.mxu0 %v890
  %990 = vmatpush.msra.mxu0 %v889
  %991 = vmatpush.msra.mxu0 %v888
  %992 = vmatmul.f32.gmra.mxu0 %v971
  %v993 = vpop.f32.mrf.mxu0
  %v994 = vadd.f32 %v968, %v993
  %995 = vmatmul.f32.gmra.mxu0 %v974
  %v996 = vpop.f32.mrf.mxu0
  %v997 = vadd.f32 %v968, %v996
  %998 = vdwg.mxu0
  %v999 = vld [vmem:[%s2] sm:$0xff]
  %v1000 = vld [vmem:[%s2 + $0x8] sm:$0x3]
  %vm1001 = vcmask 130048
  %v1003 = vsel %vm1001, %v999, 0
  %v1006 = vsel %vm1001, %v1000, 0
  %1008 = vmatpush.msra.mxu0 0.0
  %1009 = vmatpush.msra.mxu0 0.0
  %1010 = vmatpush.msra.mxu0 0.0
  %1011 = vmatpush.msra.mxu0 0.0
  %1012 = vmatpush.msra.mxu0 0.0
  %1013 = vmatpush.msra.mxu0 0.0
  %1014 = vmatpush.msra.mxu0 0.0
  %1015 = vmatpush.msra.mxu0 0.0
  %1016 = vmatpush.msra.mxu0 0.0
  %1017 = vmatpush.msra.mxu0 0.0
  %1018 = vmatpush.msra.mxu0 0.0
  %1019 = vmatpush.msra.mxu0 0.0
  %1020 = vmatpush.msra.mxu0 0.0
  %1021 = vmatpush.msra.mxu0 0.0
  %1022 = vmatpush.msra.mxu0 %v997
  %1023 = vmatpush.msra.mxu0 %v994
  %1024 = vmatmul.f32.gmra.mxu0 %v1003
  %v1025 = vpop.f32.mrf.mxu0
  %v1026 = vadd.f32 0.0, %v1025
  %1027 = vmatmul.f32.gmra.mxu0 %v1006
  %v1028 = vpop.f32.mrf.mxu0
  %v1029 = vadd.f32 0.0, %v1028
  %1030 = vdwg.mxu0
  %s1031 = scalar_lea.vmem %s3, 256
  %v1032 = vld [vmem:[%s1031] sm:$0xff]
  %v1033 = vld [vmem:[%s1031 + $0x8] sm:$0xff]
  %v1034 = vld [vmem:[%s1031 + $0x10] sm:$0xff]
  %v1035 = vld [vmem:[%s1031 + $0x18] sm:$0xff]
  %v1036 = vperm.slane %v21, 3
  %v1038 = vsel %vm25, %v1029, 0
  %v1041 = vsel %vm25, %v1032, 0
  %v1044 = vsel %vm25, %v1033, 0
  %v1047 = vsel %vm25, %v1034, 0
  %v1050 = vsel %vm25, %v1035, 0
  %1052 = vmatpush.xpose.msra.mxu0 0.0
  %1053 = vmatpush.xpose.msra.mxu0 0.0
  %1054 = vmatpush.xpose.msra.mxu0 0.0
  %1055 = vmatpush.xpose.msra.mxu0 0.0
  %1056 = vmatpush.xpose.msra.mxu0 0.0
  %1057 = vmatpush.xpose.msra.mxu0 0.0
  %1058 = vmatpush.xpose.msra.mxu0 0.0
  %1059 = vmatpush.xpose.msra.mxu0 0.0
  %1060 = vmatpush.xpose.msra.mxu0 0.0
  %1061 = vmatpush.xpose.msra.mxu0 0.0
  %1062 = vmatpush.xpose.msra.mxu0 0.0
  %1063 = vmatpush.xpose.msra.mxu0 0.0
  %1064 = vmatpush.xpose.msra.mxu0 %v1050
  %1065 = vmatpush.xpose.msra.mxu0 %v1047
  %1066 = vmatpush.xpose.msra.mxu0 %v1044
  %1067 = vmatpush.xpose.msra.mxu0 %v1041
  %1068 = vmatmul.f32.gmra.mxu0 %v1038
  %v1069 = vpop.f32.mrf.mxu0
  %v1070 = vadd.f32 %v1036, %v1069
  %1071 = vdwg.mxu0
  %v1072 = vtanh.pop %v1070
  %s1073 = scalar_lea.vmem %s3, 896
  %v1074 = vld [vmem:[%s1073] sm:$0xff]
  %v1075 = vld [vmem:[%s1073 + $0x8] sm:$0xff]
  %v1076 = vld [vmem:[%s1073 + $0x10] sm:$0xff]
  %v1077 = vld [vmem:[%s1073 + $0x18] sm:$0xff]
  %v1078 = vld [vmem:[%s1073 + $0x20] sm:$0xff]
  %v1079 = vld [vmem:[%s1073 + $0x28] sm:$0xff]
  %v1080 = vld [vmem:[%s1073 + $0x30] sm:$0xff]
  %v1081 = vld [vmem:[%s1073 + $0x38] sm:$0xff]
  %v1082 = vld [vmem:[%s1073 + $0x40] sm:$0xff]
  %v1083 = vld [vmem:[%s1073 + $0x48] sm:$0xff]
  %v1084 = vld [vmem:[%s1073 + $0x50] sm:$0xff]
  %v1085 = vld [vmem:[%s1073 + $0x58] sm:$0xff]
  %v1086 = vld [vmem:[%s1073 + $0x60] sm:$0xff]
  %v1087 = vld [vmem:[%s1073 + $0x68] sm:$0xff]
  %v1088 = vld [vmem:[%s1073 + $0x70] sm:$0xff]
  %v1089 = vld [vmem:[%s1073 + $0x78] sm:$0xff]
  %v1090 = vperm.slane %v22, 0
  %v1092 = vsel %vm25, %v1072, 0
  %v1095 = vsel %vm25, %v1074, 0
  %v1098 = vsel %vm25, %v1075, 0
  %v1101 = vsel %vm25, %v1076, 0
  %v1104 = vsel %vm25, %v1077, 0
  %v1107 = vsel %vm25, %v1078, 0
  %v1110 = vsel %vm25, %v1079, 0
  %v1113 = vsel %vm25, %v1080, 0
  %v1116 = vsel %vm25, %v1081, 0
  %v1119 = vsel %vm25, %v1082, 0
  %v1122 = vsel %vm25, %v1083, 0
  %v1125 = vsel %vm25, %v1084, 0
  %v1128 = vsel %vm25, %v1085, 0
  %v1131 = vsel %vm25, %v1086, 0
  %v1134 = vsel %vm25, %v1087, 0
  %v1137 = vsel %vm25, %v1088, 0
  %v1140 = vsel %vm25, %v1089, 0
  %1142 = vmatpush.xpose.msra.mxu0 %v1140
  %1143 = vmatpush.xpose.msra.mxu0 %v1137
  %1144 = vmatpush.xpose.msra.mxu0 %v1134
  %1145 = vmatpush.xpose.msra.mxu0 %v1131
  %1146 = vmatpush.xpose.msra.mxu0 %v1128
  %1147 = vmatpush.xpose.msra.mxu0 %v1125
  %1148 = vmatpush.xpose.msra.mxu0 %v1122
  %1149 = vmatpush.xpose.msra.mxu0 %v1119
  %1150 = vmatpush.xpose.msra.mxu0 %v1116
  %1151 = vmatpush.xpose.msra.mxu0 %v1113
  %1152 = vmatpush.xpose.msra.mxu0 %v1110
  %1153 = vmatpush.xpose.msra.mxu0 %v1107
  %1154 = vmatpush.xpose.msra.mxu0 %v1104
  %1155 = vmatpush.xpose.msra.mxu0 %v1101
  %1156 = vmatpush.xpose.msra.mxu0 %v1098
  %1157 = vmatpush.xpose.msra.mxu0 %v1095
  %1158 = vmatmul.f32.gmra.mxu0 %v1092
  %v1159 = vpop.f32.mrf.mxu0
  %v1160 = vadd.f32 %v1090, %v1159
  %1161 = vdwg.mxu0
  %s1162 = scalar_lea.vmem %s3, 384
  %v1163 = vld [vmem:[%s1162] sm:$0xff]
  %v1164 = vld [vmem:[%s1162 + $0x8] sm:$0xff]
  %v1165 = vld [vmem:[%s1162 + $0x10] sm:$0xff]
  %v1166 = vld [vmem:[%s1162 + $0x18] sm:$0xff]
  %v1167 = vperm.slane %v21, 4
  %v1169 = vsel %vm25, %v1026, 0
  %v1172 = vsel %vm25, %v1163, 0
  %v1175 = vsel %vm25, %v1164, 0
  %v1178 = vsel %vm25, %v1165, 0
  %v1181 = vsel %vm25, %v1166, 0
  %1183 = vmatpush.xpose.msra.mxu0 0.0
  %1184 = vmatpush.xpose.msra.mxu0 0.0
  %1185 = vmatpush.xpose.msra.mxu0 0.0
  %1186 = vmatpush.xpose.msra.mxu0 0.0
  %1187 = vmatpush.xpose.msra.mxu0 0.0
  %1188 = vmatpush.xpose.msra.mxu0 0.0
  %1189 = vmatpush.xpose.msra.mxu0 0.0
  %1190 = vmatpush.xpose.msra.mxu0 0.0
  %1191 = vmatpush.xpose.msra.mxu0 0.0
  %1192 = vmatpush.xpose.msra.mxu0 0.0
  %1193 = vmatpush.xpose.msra.mxu0 0.0
  %1194 = vmatpush.xpose.msra.mxu0 0.0
  %1195 = vmatpush.xpose.msra.mxu0 %v1181
  %1196 = vmatpush.xpose.msra.mxu0 %v1178
  %1197 = vmatpush.xpose.msra.mxu0 %v1175
  %1198 = vmatpush.xpose.msra.mxu0 %v1172
  %1199 = vmatmul.f32.gmra.mxu0 %v1169
  %v1200 = vpop.f32.mrf.mxu0
  %v1201 = vadd.f32 %v1167, %v1200
  %1202 = vdwg.mxu0
  %v1203 = vmul.f32 %v1201, 0.5
  %v1204 = vmul.f32 %v1201, 0.044715
  %v1205 = vmul.f32 %v1204, %v1201
  %v1206 = vmul.f32 %v1205, %v1201
  %v1207 = vadd.f32 %v1201, %v1206
  %v1208 = vmul.f32 %v1207, 0.7978846
  %v1209 = vtanh.pop %v1208
  %v1210 = vadd.f32 %v1209, 1.0
  %v1211 = vmul.f32 %v1203, %v1210
  %v1212 = vsel %vm25, %v1211, 0.0
  %1213 = vadd.xlane.f32.xlu0 %v1212
  %v1214 = vpop.xlane.xlu0 %1213
  %v1215 = vmul.f32 %v1214, %v38
  %v1216 = vsub.f32 %v1211, %v1215
  %v1217 = vmul.f32 %v1216, %v1216
  %v1218 = vsel %vm25, %v1217, 0.0
  %1219 = vadd.xlane.f32.xlu0 %v1218
  %v1220 = vpop.xlane.xlu0 %1219
  %v1221 = vmul.f32 %v1220, %v38
  %v1222 = vadd.f32 %v1221, 1e-05
  %v1223 = vrsqrt.pop %v1222
  %v1224 = vmul.f32 %v1223, %v1222
  %v1225 = vmul.f32 %v1224, %v1223
  %v1226 = vmul.f32 0.5, %v1225
  %v1227 = vsub.f32 1.5, %v1226
  %v1228 = vmul.f32 %v1223, %v1227
  %vm1229 = vweird.f32 %v1222
  %vm1230 = vweird.f32 %v1223
  %vm1231 = vmor %vm1229, %vm1230
  %v1232 = vsel %vm1231, %v1223, %v1228
  %v1233 = vmul.f32 %v1216, %v1232
  %v1234 = vperm.slane %v21, 5
  %v1235 = vmul.f32 %v1233, %v1234
  %v1236 = vperm.slane %v21, 6
  %v1237 = vadd.f32 %v1235, %v1236
  %s1238 = scalar_lea.vmem %s3, 768
  %v1239 = vld [vmem:[%s1238] sm:$0xff]
  %v1240 = vld [vmem:[%s1238 + $0x8] sm:$0xff]
  %v1241 = vld [vmem:[%s1238 + $0x10] sm:$0xff]
  %v1242 = vld [vmem:[%s1238 + $0x18] sm:$0xff]
  %v1243 = vld [vmem:[%s1238 + $0x20] sm:$0xff]
  %v1244 = vld [vmem:[%s1238 + $0x28] sm:$0xff]
  %v1245 = vld [vmem:[%s1238 + $0x30] sm:$0xff]
  %v1246 = vld [vmem:[%s1238 + $0x38] sm:$0xff]
  %v1247 = vld [vmem:[%s1238 + $0x40] sm:$0xff]
  %v1248 = vld [vmem:[%s1238 + $0x48] sm:$0xff]
  %v1249 = vld [vmem:[%s1238 + $0x50] sm:$0xff]
  %v1250 = vld [vmem:[%s1238 + $0x58] sm:$0xff]
  %v1251 = vld [vmem:[%s1238 + $0x60] sm:$0xff]
  %v1252 = vld [vmem:[%s1238 + $0x68] sm:$0xff]
  %v1253 = vld [vmem:[%s1238 + $0x70] sm:$0xff]
  %v1254 = vld [vmem:[%s1238 + $0x78] sm:$0xff]
  %v1255 = vperm.slane %v21, 7
  %v1257 = vsel %vm25, %v1237, 0
  %v1260 = vsel %vm25, %v1239, 0
  %v1263 = vsel %vm25, %v1240, 0
  %v1266 = vsel %vm25, %v1241, 0
  %v1269 = vsel %vm25, %v1242, 0
  %v1272 = vsel %vm25, %v1243, 0
  %v1275 = vsel %vm25, %v1244, 0
  %v1278 = vsel %vm25, %v1245, 0
  %v1281 = vsel %vm25, %v1246, 0
  %v1284 = vsel %vm25, %v1247, 0
  %v1287 = vsel %vm25, %v1248, 0
  %v1290 = vsel %vm25, %v1249, 0
  %v1293 = vsel %vm25, %v1250, 0
  %v1296 = vsel %vm25, %v1251, 0
  %v1299 = vsel %vm25, %v1252, 0
  %v1302 = vsel %vm25, %v1253, 0
  %v1305 = vsel %vm25, %v1254, 0
  %1307 = vmatpush.xpose.msra.mxu0 %v1305
  %1308 = vmatpush.xpose.msra.mxu0 %v1302
  %1309 = vmatpush.xpose.msra.mxu0 %v1299
  %1310 = vmatpush.xpose.msra.mxu0 %v1296
  %1311 = vmatpush.xpose.msra.mxu0 %v1293
  %1312 = vmatpush.xpose.msra.mxu0 %v1290
  %1313 = vmatpush.xpose.msra.mxu0 %v1287
  %1314 = vmatpush.xpose.msra.mxu0 %v1284
  %1315 = vmatpush.xpose.msra.mxu0 %v1281
  %1316 = vmatpush.xpose.msra.mxu0 %v1278
  %1317 = vmatpush.xpose.msra.mxu0 %v1275
  %1318 = vmatpush.xpose.msra.mxu0 %v1272
  %1319 = vmatpush.xpose.msra.mxu0 %v1269
  %1320 = vmatpush.xpose.msra.mxu0 %v1266
  %1321 = vmatpush.xpose.msra.mxu0 %v1263
  %1322 = vmatpush.xpose.msra.mxu0 %v1260
  %1323 = vmatmul.f32.gmra.mxu0 %v1257
  %v1324 = vpop.f32.mrf.mxu0
  %v1325 = vadd.f32 %v1255, %v1324
  %1326 = vdwg.mxu0
  %vm1327 = vcmask 1041408
  %v1328 = vsel %vm1327, %v1160, 0.0
  %1329 = vst [vmem:[%s5] sm:$0xff] %v1325
  %1330 = vst [vmem:[%s5 + $0x8] sm:$0xff] %v1328
  // Predicated region
  $region22: #{bert_forward.1} parent=0 // pred_check
    _
  $region23: #{bert_forward.1} parent=0 // pred_check_branch
    %1332 = sbr.rel (0) target = $region25
  $region24: #{bert_forward.1} parent=0 // pred_region
    _
  $region25: #{bert_forward.1} parent=0 // pred_fallthru
    _
  // Predicated region
  $region26: #{bert_forward.1} parent=0 // pred_check
    _
  $region27: #{bert_forward.1} parent=0 // pred_check_branch
    %1334 = sbr.rel (0) target = $region29
  $region28: #{bert_forward.1} parent=0 // pred_region
    _
  $region29: #{bert_forward.1} parent=0 // pred_fallthru
    _

</llo_original>
